<compile_context>
chip_gen: v5e
topology: v5e:2x2
jax: 0.10.0
libtpu: 0.0.40
codegen_flags: <defaults>
</compile_context>

<pallas_src>
import functools
import math

import jax
import jax.numpy as jnp
from jax.experimental import pallas as pl
from jax.experimental.pallas import tpu as pltpu


# --------------------------------------------------------------------------- #
# helpers
# --------------------------------------------------------------------------- #
def _round_up(n, m):
    return ((n + m - 1) // m) * m


def _pick_tile(n, target):
    if n <= target:
        return n
    t = target
    while t >= 8:
        if n % t == 0:
            return t
        t //= 2
    return n


def _weight_spec(shape, single_buffer):
    """BlockSpec for a grid-constant weight; single-buffered when supported."""
    ndim = len(shape)
    idx_map = lambda *_: (0,) * ndim
    if single_buffer and hasattr(pl, "Buffered"):
        try:
            return pl.BlockSpec(shape, idx_map, pipeline_mode=pl.Buffered(1))
        except TypeError:
            pass  # this jax version's BlockSpec has no pipeline_mode kwarg
    return pl.BlockSpec(shape, idx_map)


def _vmem_limit(estimate_bytes):
    # 2x headroom over the tile-footprint estimate; floor 32 MiB, cap 64 MiB so
    # the same budget fits v7x (64 MiB / TensorCore) as well as v5e/v6e (128).
    return int(min(64 * 1024 * 1024, max(32 * 1024 * 1024, 2 * estimate_bytes)))


def _call_with_weight_fallback(build, args, single_buffer):
    """Run the kernel built with single-buffered weights; if pl.Buffered(1) is
    rejected at lowering time on this jax version, rebuild with defaults."""
    if not single_buffer:
        return build(False)(*args)
    try:
        return build(True)(*args)
    except Exception:
        return build(False)(*args)


# --------------------------------------------------------------------------- #
# kernel 1: linear1 + linear2 projection (runs once per token)
# --------------------------------------------------------------------------- #
def _proj_kernel(x_ref, w1_ref, w2_ref, z_ref, k_ref, v_ref, *,
                 num_heads, head_dim, proj, compute_dtype):
    x = x_ref[0]                                                 # (tl, Din_p)
    z = jnp.dot(x, w1_ref[...], preferred_element_type=jnp.float32)   # (tl, P)
    kv = jnp.dot(z.astype(compute_dtype), w2_ref[...],
                 preferred_element_type=jnp.float32)             # (tl, 2P)
    z_ref[0] = z.astype(z_ref.dtype)                             # f32 residual/query
    k = kv[:, :proj].astype(compute_dtype)   # already scaled by head_dim**-0.5
    v = kv[:, proj:].astype(compute_dtype)
    # Head-major writeback, done ONCE per token tile; the attention kernel then
    # consumes (H, tkv, hd) tiles with no per-step relayout.
    for h in range(num_heads):
        sl = slice(h * head_dim, (h + 1) * head_dim)
        k_ref[0, h] = k[:, sl]
        v_ref[0, h] = v[:, sl]


# --------------------------------------------------------------------------- #
# kernel 2: flash-style attention + rezero residual + linear3
# --------------------------------------------------------------------------- #
def _attn_kernel(z_ref, k_ref, v_ref, w3_ref, alpha_ref, o_ref,
                 q_ref, m_ref, l_ref, acc_ref, *,
                 num_heads, head_dim, proj, compute_dtype):
    ki = pl.program_id(2)
    nk = pl.num_programs(2)
    H, hd = num_heads, head_dim

    # ---- per q-tile init: cache compute-dtype query once + softmax state ----
    @pl.when(ki == 0)
    def _init():
        qc = z_ref[0].astype(compute_dtype)                      # (tq, P)
        for h in range(H):
            q_ref[h] = qc[:, h * hd:(h + 1) * hd]                # (tq, hd)
        m_ref[...] = jnp.full(m_ref.shape, -jnp.inf, dtype=m_ref.dtype)
        l_ref[...] = jnp.zeros(l_ref.shape, dtype=l_ref.dtype)
        acc_ref[...] = jnp.zeros(acc_ref.shape, dtype=acc_ref.dtype)

    q3 = q_ref[...]                                              # (H, tq, hd)
    k3 = k_ref[0]                                                # (H, tkv, hd)
    v3 = v_ref[0]                                                # (H, tkv, hd)

    # head-batched scores + online softmax (f32 math)
    s = jnp.einsum('hqd,hkd->hqk', q3, k3,
                   preferred_element_type=jnp.float32)           # (H, tq, tkv)
    m_prev = m_ref[...]
    m_new = jnp.maximum(m_prev, jnp.max(s, axis=-1, keepdims=True))
    corr = jnp.exp(m_prev - m_new)
    p = jnp.exp(s - m_new)
    l_ref[...] = corr * l_ref[...] + jnp.sum(p, axis=-1, keepdims=True)
    acc_ref[...] = corr * acc_ref[...] + jnp.einsum(
        'hqk,hkd->hqd', p.astype(compute_dtype), v3,
        preferred_element_type=jnp.float32)
    m_ref[...] = m_new

    # ---- finalize: normalize, rezero residual, linear3, lane-dense store ----
    @pl.when(ki == nk - 1)
    def _finalize():
        inv_l = pl.reciprocal(l_ref[...], approx=True)           # (H, tq, 1)
        o3 = acc_ref[...] * inv_l                                # (H, tq, hd)
        attn = jnp.concatenate([o3[h] for h in range(H)], axis=-1)  # (tq, P)
        attn = attn * alpha_ref[0] + z_ref[0]                    # f32 residual
        out = jnp.dot(attn.astype(compute_dtype), w3_ref[...],
                      preferred_element_type=jnp.float32)        # (tq, Dout_p)
        o_ref[0] = out.astype(o_ref.dtype)


# --------------------------------------------------------------------------- #
# wrappers
# --------------------------------------------------------------------------- #
def sruppattn_forward_bld(x_bld, w1, w2, w3, alpha, *, num_heads,
                          compute_dtype=jnp.bfloat16,
                          tile_q=None, tile_kv=None, tile_proj=None,
                          single_buffer_weights=True):
    """Batch-major entry point: x_bld (B, L, in_features) -> (B, L, out_features).

    Generation notes: defaults (256-wide tiles) target v6e/v7x; on v5e pass
    tile_kv=128 to match its 128-wide MXU contraction.
    """
    B, L, Din = x_bld.shape
    P = w1.shape[0]
    Dout = w3.shape[0]
    if P % num_heads != 0:
        raise ValueError("proj_features must be divisible by num_heads")
    hd = P // num_heads
    out_dtype = x_bld.dtype
    cbytes = jnp.dtype(compute_dtype).itemsize
    obytes = jnp.dtype(out_dtype).itemsize

    tq = tile_q if tile_q is not None else _pick_tile(L, 256)
    tkv = tile_kv if tile_kv is not None else _pick_tile(L, 256)
    tl = tile_proj if tile_proj is not None else _pick_tile(L, 256)
    assert L % tq == 0 and L % tkv == 0 and L % tl == 0
    # TODO(synk): pad / mask ragged sequence lengths instead of requiring divisibility.

    # Pre-transposed lane-major weights; fold 1/sqrt(head_dim) into the k-half
    # of linear2 so q (== f32 residual z) is never scaled in-kernel.
    scaling = float(hd) ** (-0.5)
    w1t = w1.T                                                    # (Din, P)
    w2t = jnp.concatenate([w2[:P] * scaling, w2[P:]], axis=0).T   # (P, 2P)
    w3t = w3.T                                                    # (P, Dout)

    # Lane-dense padding of the feature dims.
    Din_p = _round_up(Din, 128)
    Dout_p = _round_up(Dout, 128)
    x_c = x_bld
    if Din_p != Din:
        x_c = jnp.pad(x_c, ((0, 0), (0, 0), (0, Din_p - Din)))
        w1t = jnp.pad(w1t, ((0, Din_p - Din), (0, 0)))
    if Dout_p != Dout:
        w3t = jnp.pad(w3t, ((0, 0), (0, Dout_p - Dout)))

    x_c = x_c.astype(compute_dtype)
    w1t = w1t.astype(compute_dtype)
    w2t = w2t.astype(compute_dtype)
    w3t = w3t.astype(compute_dtype)
    alpha = alpha.astype(jnp.float32)

    # ------------------- kernel 1: projection (once per token) -------------
    nl = L // tl
    proj_flops = int(2 * B * L * Din_p * P + 2 * B * L * P * 2 * P)
    proj_bytes = int(B * L * Din_p * cbytes
                     + (Din_p * P + P * 2 * P) * cbytes
                     + B * L * P * 4                 # z write (f32)
                     + 2 * B * L * P * cbytes)       # k, v writes
    proj_cost = pl.CostEstimate(flops=proj_flops, transcendentals=0,
                                bytes_accessed=proj_bytes)
    proj_vmem = int(2 * tl * Din_p * cbytes
                    + 2 * (tl * P * 4 + 2 * tl * P * cbytes)
                    + 2 * (Din_p * P + P * 2 * P) * cbytes)

    def build_proj(single_buffer):
        kern = functools.partial(_proj_kernel, num_heads=num_heads, head_dim=hd,
                                 proj=P, compute_dtype=compute_dtype)
        return pl.pallas_call(
            kern,
            out_shape=(jax.ShapeDtypeStruct((B, L, P), jnp.float32),
                       jax.ShapeDtypeStruct((B, num_heads, L, hd), compute_dtype),
                       jax.ShapeDtypeStruct((B, num_heads, L, hd), compute_dtype)),
            grid_spec=pltpu.PrefetchScalarGridSpec(
                num_scalar_prefetch=0,
                grid=(B, nl),
                in_specs=[
                    pl.BlockSpec((1, tl, Din_p), lambda b, li: (b, li, 0)),
                    _weight_spec((Din_p, P), single_buffer),
                    _weight_spec((P, 2 * P), single_buffer),
                ],
                out_specs=[
                    pl.BlockSpec((1, tl, P), lambda b, li: (b, li, 0)),
                    pl.BlockSpec((1, num_heads, tl, hd), lambda b, li: (b, 0, li, 0)),
                    pl.BlockSpec((1, num_heads, tl, hd), lambda b, li: (b, 0, li, 0)),
                ]),
            compiler_params=pltpu.CompilerParams(
                dimension_semantics=("parallel", "parallel"),
                vmem_limit_bytes=_vmem_limit(proj_vmem)),
            cost_estimate=proj_cost,
        )

    z, k_hm, v_hm = _call_with_weight_fallback(
        build_proj, (x_c, w1t, w2t), single_buffer_weights)

    # ------------------- kernel 2: flash attention + residual + linear3 ----
    nq, nk = L // tq, L // tkv
    attn_flops = int(4 * B * num_heads * L * L * hd + 2 * B * L * P * Dout_p)
    attn_trans = int(B * num_heads * L * L)
    attn_bytes = int(B * L * P * 4                      # z (each q-tile read once)
                     + nq * 2 * B * L * P * cbytes      # k, v re-read per q-tile
                     + P * Dout_p * cbytes
                     + B * L * Dout_p * obytes)
    attn_cost = pl.CostEstimate(flops=attn_flops, transcendentals=attn_trans,
                                bytes_accessed=attn_bytes)
    attn_vmem = int(2 * tq * P * 4
                    + 4 * num_heads * tkv * max(hd, 128) * cbytes
                    + 2 * tq * Dout_p * obytes
                    + 2 * P * Dout_p * cbytes
                    + num_heads * tq * max(hd, 128) * (cbytes + 4)
                    + 2 * num_heads * tq * 128 * 4)

    def build_attn(single_buffer):
        kern = functools.partial(_attn_kernel, num_heads=num_heads, head_dim=hd,
                                 proj=P, compute_dtype=compute_dtype)
        return pl.pallas_call(
            kern,
            out_shape=jax.ShapeDtypeStruct((B, L, Dout_p), out_dtype),
            grid_spec=pltpu.PrefetchScalarGridSpec(
                num_scalar_prefetch=0,
                grid=(B, nq, nk),
                in_specs=[
                    pl.BlockSpec((1, tq, P), lambda b, qi, ki: (b, qi, 0)),       # z (query + residual)
                    pl.BlockSpec((1, num_heads, tkv, hd),
                                 lambda b, qi, ki: (b, 0, ki, 0)),                # k (head-major)
                    pl.BlockSpec((1, num_heads, tkv, hd),
                                 lambda b, qi, ki: (b, 0, ki, 0)),                # v (head-major)
                    _weight_spec((P, Dout_p), single_buffer),                     # w3^T (padded)
                    pl.BlockSpec(memory_space=pltpu.MemorySpace.SMEM),            # alpha
                ],
                out_specs=pl.BlockSpec((1, tq, Dout_p), lambda b, qi, ki: (b, qi, 0)),
                scratch_shapes=[
                    pltpu.VMEM((num_heads, tq, hd), compute_dtype),   # cached query
                    pltpu.VMEM((num_heads, tq, 1), jnp.float32),      # running max
                    pltpu.VMEM((num_heads, tq, 1), jnp.float32),      # running sum
                    pltpu.VMEM((num_heads, tq, hd), jnp.float32),     # output accumulator
                ]),
            compiler_params=pltpu.CompilerParams(
                dimension_semantics=("parallel", "parallel", "arbitrary"),
                vmem_limit_bytes=_vmem_limit(attn_vmem)),
            cost_estimate=attn_cost,
        )

    out_bld = _call_with_weight_fallback(
        build_attn, (z, k_hm, v_hm, w3t, alpha), single_buffer_weights)

    if Dout_p != Dout:
        out_bld = out_bld[..., :Dout]
    return out_bld


def sruppattn_forward(x_lbd, w1, w2, w3, alpha, *, num_heads,
                      compute_dtype=jnp.bfloat16,
                      tile_q=None, tile_kv=None, tile_proj=None):
    """Module-compatible (L, B, in_features) -> (L, B, out_features).

    NOTE: batch-major `sruppattn_forward_bld` is the primary entry point; the
    two transposes below are full HBM round trips and should be avoided if the
    surrounding model already keeps activations as (B, L, D).
    """
    x_bld = jnp.transpose(x_lbd, (1, 0, 2))
    out_bld = sruppattn_forward_bld(
        x_bld, w1, w2, w3, alpha, num_heads=num_heads,
        compute_dtype=compute_dtype, tile_q=tile_q, tile_kv=tile_kv,
        tile_proj=tile_proj)
    return jnp.transpose(out_bld, (1, 0, 2))


# --------------------------------------------------------------------------- #
# reference + test
# --------------------------------------------------------------------------- #
def _xavier_uniform(key, fan_out, fan_in, dtype=jnp.float32):
    bound = math.sqrt(6.0 / (fan_in + fan_out))
    return jax.random.uniform(key, (fan_out, fan_in), dtype, -bound, bound)


def _ref_forward(x, w1, w2, w3, alpha, num_heads):
    # Pure-JAX f32 replica of SRUppAttention.forward (no memory / masks / LN).
    L, B, _ = x.shape
    P = w1.shape[0]
    hd = P // num_heads
    scaling = float(hd) ** (-0.5)
    z = x @ w1.T                                   # (L, B, P)
    kv = z @ w2.T                                  # (L, B, 2P)
    k, v = kv[..., :P], kv[..., P:]
    q = z.reshape(L, B * num_heads, hd).transpose(1, 0, 2) * scaling
    kk = k.reshape(L, B * num_heads, hd).transpose(1, 0, 2)
    vv = v.reshape(L, B * num_heads, hd).transpose(1, 0, 2)
    w = jax.nn.softmax(jnp.einsum('bld,bmd->blm', q, kk), axis=-1)
    o = jnp.einsum('blm,bmd->bld', w, vv).transpose(1, 0, 2).reshape(L, B, P)
    o = o * alpha[0] + z
    return o @ w3.T


if __name__ == "__main__":
    # Small, TPU-friendly hyper-params consistent with the module.
    seq_len = 128
    batch = 2
    in_features = 64           # not a multiple of 128 -> exercises Din padding
    proj_features = 128
    out_features = 96          # not a multiple of 128 -> exercises Dout padding
    num_heads = 2
    rezero_init_alpha = 0.5    # nonzero so the attention branch is exercised

    key = jax.random.PRNGKey(0)
    k_x, k_w1, k_w2, k_w3 = jax.random.split(key, 4)

    w1 = _xavier_uniform(k_w1, proj_features, in_features)          # linear1
    w2 = _xavier_uniform(k_w2, proj_features * 2, proj_features)    # linear2
    w3 = _xavier_uniform(k_w3, out_features, proj_features)         # linear3
    alpha = jnp.array([rezero_init_alpha], dtype=jnp.float32)
    x = jax.random.normal(k_x, (seq_len, batch, in_features), jnp.float32)

    ref = _ref_forward(x, w1, w2, w3, alpha, num_heads)

    # 1) f32 compute path, small tiles: 2 q-tiles x 2 kv-tiles x 2 batches
    #    exercises the online-softmax accumulation across kv steps.
    out_f32 = sruppattn_forward(x, w1, w2, w3, alpha, num_heads=num_heads,
                                compute_dtype=jnp.float32,
                                tile_q=64, tile_kv=64, tile_proj=64)
    out_f32 = jax.block_until_ready(out_f32)
    assert out_f32.shape == (seq_len, batch, out_features)
    assert jnp.allclose(out_f32, ref, rtol=1e-2, atol=1e-2), "f32 path mismatch"

    # 2) default bf16 MXU path with default tiles: looser tolerance.
    out_bf16 = sruppattn_forward(x, w1, w2, w3, alpha, num_heads=num_heads)
    out_bf16 = jax.block_until_ready(out_bf16)
    assert out_bf16.shape == (seq_len, batch, out_features)
    assert jnp.allclose(out_bf16, ref, rtol=1e-1, atol=1e-1), "bf16 path mismatch"

    print("KERNEL_OK")
</pallas_src>

<mosaic_0001>
module attributes {stable_mosaic.version = 11 : i64} {
  func.func @_proj_kernel(%arg0: i32, %arg1: i32, %arg2: memref<1x64x128xf32, #tpu.memory_space<vmem>>, %arg3: memref<128x128xf32, #tpu.memory_space<vmem>>, %arg4: memref<128x256xf32, #tpu.memory_space<vmem>>, %arg5: memref<1x64x128xf32, #tpu.memory_space<vmem>>, %arg6: memref<1x2x64x64xf32, #tpu.memory_space<vmem>>, %arg7: memref<1x2x64x64xf32, #tpu.memory_space<vmem>>) attributes {dimension_semantics = [#tpu.dimension_semantics<parallel>, #tpu.dimension_semantics<parallel>], iteration_bounds = array<i64: 2, 2>, scalar_prefetch = 0 : i64, scratch_operands = 0 : i64, tpu.core_type = #tpu.core_type<tc>, window_params = [{transform_indices = @transform_0, window_bounds = array<i64: 1, 64, 128>}, {pipeline_mode = #tpu.pipeline_mode<synchronous>, transform_indices = @transform_1, window_bounds = array<i64: 128, 128>}, {pipeline_mode = #tpu.pipeline_mode<synchronous>, transform_indices = @transform_2, window_bounds = array<i64: 128, 256>}, {transform_indices = @transform_3, window_bounds = array<i64: 1, 64, 128>}, {transform_indices = @transform_4, window_bounds = array<i64: 1, 2, 64, 64>}, {transform_indices = @transform_5, window_bounds = array<i64: 1, 2, 64, 64>}]} {
    %c0 = arith.constant 0 : index
    %c0_0 = arith.constant 0 : index
    %c0_1 = arith.constant 0 : index
    %0 = vector.load %arg2[%c0, %c0_0, %c0_1] : memref<1x64x128xf32, #tpu.memory_space<vmem>>, vector<1x64x128xf32>
    %1 = vector.shape_cast %0 : vector<1x64x128xf32> to vector<64x128xf32>
    %c0_2 = arith.constant 0 : index
    %c0_3 = arith.constant 0 : index
    %2 = vector.load %arg3[%c0_2, %c0_3] : memref<128x128xf32, #tpu.memory_space<vmem>>, vector<128x128xf32>
    %cst = arith.constant dense<0.000000e+00> : vector<64x128xf32>
    %3 = tpu.matmul %1, %2, %cst {dimension_numbers = #tpu.dot_dimension_numbers<[1], [0], [0], [1], [0, 0, 1, 1], [], []>} : vector<64x128xf32>, vector<128x128xf32>, vector<64x128xf32> -> vector<64x128xf32>
    %c0_4 = arith.constant 0 : index
    %c0_5 = arith.constant 0 : index
    %4 = vector.load %arg4[%c0_4, %c0_5] : memref<128x256xf32, #tpu.memory_space<vmem>>, vector<128x256xf32>
    %cst_6 = arith.constant dense<0.000000e+00> : vector<64x256xf32>
    %5 = tpu.matmul %3, %4, %cst_6 {dimension_numbers = #tpu.dot_dimension_numbers<[1], [0], [0], [1], [0, 0, 1, 1], [], []>} : vector<64x128xf32>, vector<128x256xf32>, vector<64x256xf32> -> vector<64x256xf32>
    %c0_7 = arith.constant 0 : index
    %c0_8 = arith.constant 0 : index
    %c0_9 = arith.constant 0 : index
    %6 = vector.load %arg5[%c0_7, %c0_8, %c0_9] : memref<1x64x128xf32, #tpu.memory_space<vmem>>, vector<1x64x128xf32>
    %7 = vector.shape_cast %6 : vector<1x64x128xf32> to vector<64x128xf32>
    %8 = vector.shape_cast %3 : vector<64x128xf32> to vector<1x64x128xf32>
    tpu.vector_store %arg5[%c0_7, %c0_8, %c0_9], %8 {strides = array<i32>} : memref<1x64x128xf32, #tpu.memory_space<vmem>>, vector<1x64x128xf32>,
    %9 = vector.extract_strided_slice %5 {offsets = [0, 0], sizes = [64, 128], strides = [1, 1]} : vector<64x256xf32> to vector<64x128xf32>
    %10 = vector.extract_strided_slice %5 {offsets = [0, 128], sizes = [64, 128], strides = [1, 1]} : vector<64x256xf32> to vector<64x128xf32>
    %11 = vector.extract_strided_slice %9 {offsets = [0, 0], sizes = [64, 64], strides = [1, 1]} : vector<64x128xf32> to vector<64x64xf32>
    %c0_10 = arith.constant 0 : index
    %c0_11 = arith.constant 0 : index
    %c0_12 = arith.constant 0 : index
    %c0_13 = arith.constant 0 : index
    %12 = vector.load %arg6[%c0_10, %c0_11, %c0_12, %c0_13] : memref<1x2x64x64xf32, #tpu.memory_space<vmem>>, vector<1x1x64x64xf32>
    %13 = vector.shape_cast %12 : vector<1x1x64x64xf32> to vector<64x64xf32>
    %14 = vector.shape_cast %11 : vector<64x64xf32> to vector<1x1x64x64xf32>
    tpu.vector_store %arg6[%c0_10, %c0_11, %c0_12, %c0_13], %14 {strides = array<i32>} : memref<1x2x64x64xf32, #tpu.memory_space<vmem>>, vector<1x1x64x64xf32>,
    %15 = vector.extract_strided_slice %10 {offsets = [0, 0], sizes = [64, 64], strides = [1, 1]} : vector<64x128xf32> to vector<64x64xf32>
    %c0_14 = arith.constant 0 : index
    %c0_15 = arith.constant 0 : index
    %c0_16 = arith.constant 0 : index
    %c0_17 = arith.constant 0 : index
    %16 = vector.load %arg7[%c0_14, %c0_15, %c0_16, %c0_17] : memref<1x2x64x64xf32, #tpu.memory_space<vmem>>, vector<1x1x64x64xf32>
    %17 = vector.shape_cast %16 : vector<1x1x64x64xf32> to vector<64x64xf32>
    %18 = vector.shape_cast %15 : vector<64x64xf32> to vector<1x1x64x64xf32>
    tpu.vector_store %arg7[%c0_14, %c0_15, %c0_16, %c0_17], %18 {strides = array<i32>} : memref<1x2x64x64xf32, #tpu.memory_space<vmem>>, vector<1x1x64x64xf32>,
    %19 = vector.extract_strided_slice %9 {offsets = [0, 64], sizes = [64, 64], strides = [1, 1]} : vector<64x128xf32> to vector<64x64xf32>
    %c0_18 = arith.constant 0 : index
    %c1 = arith.constant 1 : index
    %c0_19 = arith.constant 0 : index
    %c0_20 = arith.constant 0 : index
    %20 = vector.load %arg6[%c0_18, %c1, %c0_19, %c0_20] : memref<1x2x64x64xf32, #tpu.memory_space<vmem>>, vector<1x1x64x64xf32>
    %21 = vector.shape_cast %20 : vector<1x1x64x64xf32> to vector<64x64xf32>
    %22 = vector.shape_cast %19 : vector<64x64xf32> to vector<1x1x64x64xf32>
    tpu.vector_store %arg6[%c0_18, %c1, %c0_19, %c0_20], %22 {strides = array<i32>} : memref<1x2x64x64xf32, #tpu.memory_space<vmem>>, vector<1x1x64x64xf32>,
    %23 = vector.extract_strided_slice %10 {offsets = [0, 64], sizes = [64, 64], strides = [1, 1]} : vector<64x128xf32> to vector<64x64xf32>
    %c0_21 = arith.constant 0 : index
    %c1_22 = arith.constant 1 : index
    %c0_23 = arith.constant 0 : index
    %c0_24 = arith.constant 0 : index
    %24 = vector.load %arg7[%c0_21, %c1_22, %c0_23, %c0_24] : memref<1x2x64x64xf32, #tpu.memory_space<vmem>>, vector<1x1x64x64xf32>
    %25 = vector.shape_cast %24 : vector<1x1x64x64xf32> to vector<64x64xf32>
    %26 = vector.shape_cast %23 : vector<64x64xf32> to vector<1x1x64x64xf32>
    tpu.vector_store %arg7[%c0_21, %c1_22, %c0_23, %c0_24], %26 {strides = array<i32>} : memref<1x2x64x64xf32, #tpu.memory_space<vmem>>, vector<1x1x64x64xf32>,
    return
  }
  func.func @transform_0(%arg0: i32, %arg1: i32) -> (i32, i32, i32) {
    %c0_i32 = arith.constant 0 : i32
    %c0_i32_0 = arith.constant 0 : i32
    return %arg0, %arg1, %c0_i32 : i32, i32, i32
  }
  func.func @transform_1(%arg0: i32, %arg1: i32) -> (i32, i32) {
    %c0_i32 = arith.constant 0 : i32
    %c0_i32_0 = arith.constant 0 : i32
    %c0_i32_1 = arith.constant 0 : i32
    return %c0_i32, %c0_i32_0 : i32, i32
  }
  func.func @transform_2(%arg0: i32, %arg1: i32) -> (i32, i32) {
    %c0_i32 = arith.constant 0 : i32
    %c0_i32_0 = arith.constant 0 : i32
    %c0_i32_1 = arith.constant 0 : i32
    return %c0_i32, %c0_i32_0 : i32, i32
  }
  func.func @transform_3(%arg0: i32, %arg1: i32) -> (i32, i32, i32) {
    %c0_i32 = arith.constant 0 : i32
    %c0_i32_0 = arith.constant 0 : i32
    return %arg0, %arg1, %c0_i32 : i32, i32, i32
  }
  func.func @transform_4(%arg0: i32, %arg1: i32) -> (i32, i32, i32, i32) {
    %c0_i32 = arith.constant 0 : i32
    %c0_i32_0 = arith.constant 0 : i32
    %c0_i32_1 = arith.constant 0 : i32
    return %arg0, %c0_i32, %arg1, %c0_i32_0 : i32, i32, i32, i32
  }
  func.func @transform_5(%arg0: i32, %arg1: i32) -> (i32, i32, i32, i32) {
    %c0_i32 = arith.constant 0 : i32
    %c0_i32_0 = arith.constant 0 : i32
    %c0_i32_1 = arith.constant 0 : i32
    return %arg0, %c0_i32, %arg1, %c0_i32_0 : i32, i32, i32, i32
  }
}

module attributes {stable_mosaic.version = 11 : i64} {
  func.func @_proj_kernel(%arg0: i32, %arg1: i32, %arg2: memref<1x64x128xf32, #tpu.memory_space<vmem>>, %arg3: memref<128x128xf32, #tpu.memory_space<vmem>>, %arg4: memref<128x256xf32, #tpu.memory_space<vmem>>, %arg5: memref<1x64x128xf32, #tpu.memory_space<vmem>>, %arg6: memref<1x2x64x64xf32, #tpu.memory_space<vmem>>, %arg7: memref<1x2x64x64xf32, #tpu.memory_space<vmem>>) attributes {dimension_semantics = [#tpu.dimension_semantics<parallel>, #tpu.dimension_semantics<parallel>], iteration_bounds = array<i64: 2, 2>, scalar_prefetch = 0 : i64, scratch_operands = 0 : i64, tpu.core_type = #tpu.core_type<tc>, window_params = [{transform_indices = @transform_0, window_bounds = array<i64: 1, 64, 128>}, {pipeline_mode = #tpu.pipeline_mode<synchronous>, transform_indices = @transform_1, window_bounds = array<i64: 128, 128>}, {pipeline_mode = #tpu.pipeline_mode<synchronous>, transform_indices = @transform_2, window_bounds = array<i64: 128, 256>}, {transform_indices = @transform_3, window_bounds = array<i64: 1, 64, 128>}, {transform_indices = @transform_4, window_bounds = array<i64: 1, 2, 64, 64>}, {transform_indices = @transform_5, window_bounds = array<i64: 1, 2, 64, 64>}]} {
    %c0 = arith.constant 0 : index
    %c0_0 = arith.constant 0 : index
    %c0_1 = arith.constant 0 : index
    %0 = vector.load %arg2[%c0, %c0_0, %c0_1] : memref<1x64x128xf32, #tpu.memory_space<vmem>>, vector<1x64x128xf32>
    %1 = vector.shape_cast %0 : vector<1x64x128xf32> to vector<64x128xf32>
    %c0_2 = arith.constant 0 : index
    %c0_3 = arith.constant 0 : index
    %2 = vector.load %arg3[%c0_2, %c0_3] : memref<128x128xf32, #tpu.memory_space<vmem>>, vector<128x128xf32>
    %cst = arith.constant dense<0.000000e+00> : vector<64x128xf32>
    %3 = tpu.matmul %1, %2, %cst {dimension_numbers = #tpu.dot_dimension_numbers<[1], [0], [0], [1], [0, 0, 1, 1], [], []>} : vector<64x128xf32>, vector<128x128xf32>, vector<64x128xf32> -> vector<64x128xf32>
    %c0_4 = arith.constant 0 : index
    %c0_5 = arith.constant 0 : index
    %4 = vector.load %arg4[%c0_4, %c0_5] : memref<128x256xf32, #tpu.memory_space<vmem>>, vector<128x256xf32>
    %cst_6 = arith.constant dense<0.000000e+00> : vector<64x256xf32>
    %5 = tpu.matmul %3, %4, %cst_6 {dimension_numbers = #tpu.dot_dimension_numbers<[1], [0], [0], [1], [0, 0, 1, 1], [], []>} : vector<64x128xf32>, vector<128x256xf32>, vector<64x256xf32> -> vector<64x256xf32>
    %c0_7 = arith.constant 0 : index
    %c0_8 = arith.constant 0 : index
    %c0_9 = arith.constant 0 : index
    %6 = vector.load %arg5[%c0_7, %c0_8, %c0_9] : memref<1x64x128xf32, #tpu.memory_space<vmem>>, vector<1x64x128xf32>
    %7 = vector.shape_cast %6 : vector<1x64x128xf32> to vector<64x128xf32>
    %8 = vector.shape_cast %3 : vector<64x128xf32> to vector<1x64x128xf32>
    tpu.vector_store %arg5[%c0_7, %c0_8, %c0_9], %8 {strides = array<i32>} : memref<1x64x128xf32, #tpu.memory_space<vmem>>, vector<1x64x128xf32>,
    %9 = vector.extract_strided_slice %5 {offsets = [0, 0], sizes = [64, 128], strides = [1, 1]} : vector<64x256xf32> to vector<64x128xf32>
    %10 = vector.extract_strided_slice %5 {offsets = [0, 128], sizes = [64, 128], strides = [1, 1]} : vector<64x256xf32> to vector<64x128xf32>
    %11 = vector.extract_strided_slice %9 {offsets = [0, 0], sizes = [64, 64], strides = [1, 1]} : vector<64x128xf32> to vector<64x64xf32>
    %c0_10 = arith.constant 0 : index
    %c0_11 = arith.constant 0 : index
    %c0_12 = arith.constant 0 : index
    %c0_13 = arith.constant 0 : index
    %12 = vector.load %arg6[%c0_10, %c0_11, %c0_12, %c0_13] : memref<1x2x64x64xf32, #tpu.memory_space<vmem>>, vector<1x1x64x64xf32>
    %13 = vector.shape_cast %12 : vector<1x1x64x64xf32> to vector<64x64xf32>
    %14 = vector.shape_cast %11 : vector<64x64xf32> to vector<1x1x64x64xf32>
    tpu.vector_store %arg6[%c0_10, %c0_11, %c0_12, %c0_13], %14 {strides = array<i32>} : memref<1x2x64x64xf32, #tpu.memory_space<vmem>>, vector<1x1x64x64xf32>,
    %15 = vector.extract_strided_slice %10 {offsets = [0, 0], sizes = [64, 64], strides = [1, 1]} : vector<64x128xf32> to vector<64x64xf32>
    %c0_14 = arith.constant 0 : index
    %c0_15 = arith.constant 0 : index
    %c0_16 = arith.constant 0 : index
    %c0_17 = arith.constant 0 : index
    %16 = vector.load %arg7[%c0_14, %c0_15, %c0_16, %c0_17] : memref<1x2x64x64xf32, #tpu.memory_space<vmem>>, vector<1x1x64x64xf32>
    %17 = vector.shape_cast %16 : vector<1x1x64x64xf32> to vector<64x64xf32>
    %18 = vector.shape_cast %15 : vector<64x64xf32> to vector<1x1x64x64xf32>
    tpu.vector_store %arg7[%c0_14, %c0_15, %c0_16, %c0_17], %18 {strides = array<i32>} : memref<1x2x64x64xf32, #tpu.memory_space<vmem>>, vector<1x1x64x64xf32>,
    %19 = vector.extract_strided_slice %9 {offsets = [0, 64], sizes = [64, 64], strides = [1, 1]} : vector<64x128xf32> to vector<64x64xf32>
    %c0_18 = arith.constant 0 : index
    %c1 = arith.constant 1 : index
    %c0_19 = arith.constant 0 : index
    %c0_20 = arith.constant 0 : index
    %20 = vector.load %arg6[%c0_18, %c1, %c0_19, %c0_20] : memref<1x2x64x64xf32, #tpu.memory_space<vmem>>, vector<1x1x64x64xf32>
    %21 = vector.shape_cast %20 : vector<1x1x64x64xf32> to vector<64x64xf32>
    %22 = vector.shape_cast %19 : vector<64x64xf32> to vector<1x1x64x64xf32>
    tpu.vector_store %arg6[%c0_18, %c1, %c0_19, %c0_20], %22 {strides = array<i32>} : memref<1x2x64x64xf32, #tpu.memory_space<vmem>>, vector<1x1x64x64xf32>,
    %23 = vector.extract_strided_slice %10 {offsets = [0, 64], sizes = [64, 64], strides = [1, 1]} : vector<64x128xf32> to vector<64x64xf32>
    %c0_21 = arith.constant 0 : index
    %c1_22 = arith.constant 1 : index
    %c0_23 = arith.constant 0 : index
    %c0_24 = arith.constant 0 : index
    %24 = vector.load %arg7[%c0_21, %c1_22, %c0_23, %c0_24] : memref<1x2x64x64xf32, #tpu.memory_space<vmem>>, vector<1x1x64x64xf32>
    %25 = vector.shape_cast %24 : vector<1x1x64x64xf32> to vector<64x64xf32>
    %26 = vector.shape_cast %23 : vector<64x64xf32> to vector<1x1x64x64xf32>
    tpu.vector_store %arg7[%c0_21, %c1_22, %c0_23, %c0_24], %26 {strides = array<i32>} : memref<1x2x64x64xf32, #tpu.memory_space<vmem>>, vector<1x1x64x64xf32>,
    return
  }
  func.func @transform_0(%arg0: i32, %arg1: i32) -> (i32, i32, i32) {
    %c0_i32 = arith.constant 0 : i32
    %c0_i32_0 = arith.constant 0 : i32
    return %arg0, %arg1, %c0_i32 : i32, i32, i32
  }
  func.func @transform_1(%arg0: i32, %arg1: i32) -> (i32, i32) {
    %c0_i32 = arith.constant 0 : i32
    %c0_i32_0 = arith.constant 0 : i32
    %c0_i32_1 = arith.constant 0 : i32
    return %c0_i32, %c0_i32_0 : i32, i32
  }
  func.func @transform_2(%arg0: i32, %arg1: i32) -> (i32, i32) {
    %c0_i32 = arith.constant 0 : i32
    %c0_i32_0 = arith.constant 0 : i32
    %c0_i32_1 = arith.constant 0 : i32
    return %c0_i32, %c0_i32_0 : i32, i32
  }
  func.func @transform_3(%arg0: i32, %arg1: i32) -> (i32, i32, i32) {
    %c0_i32 = arith.constant 0 : i32
    %c0_i32_0 = arith.constant 0 : i32
    return %arg0, %arg1, %c0_i32 : i32, i32, i32
  }
  func.func @transform_4(%arg0: i32, %arg1: i32) -> (i32, i32, i32, i32) {
    %c0_i32 = arith.constant 0 : i32
    %c0_i32_0 = arith.constant 0 : i32
    %c0_i32_1 = arith.constant 0 : i32
    return %arg0, %c0_i32, %arg1, %c0_i32_0 : i32, i32, i32, i32
  }
  func.func @transform_5(%arg0: i32, %arg1: i32) -> (i32, i32, i32, i32) {
    %c0_i32 = arith.constant 0 : i32
    %c0_i32_0 = arith.constant 0 : i32
    %c0_i32_1 = arith.constant 0 : i32
    return %arg0, %c0_i32, %arg1, %c0_i32_0 : i32, i32, i32, i32
  }
}

</mosaic_0001>

<llo_original>
// kernel: tpu_custom_call.1
$region0: #{tpu_custom_call.1}
  #allocation0 [shape = 'u32[]', space=smem, size = 0x4, offset = 0x4, fixed_abs, tag = 'smem constant byte address 0x4 - core index']
  #allocation1 [shape = 'u32[72,128]{1,0:T(1,128)}', space=vmem, size = 0x9000, scoped, tag = 'internal scratch']
  %s0 = inlined_call_operand.hbm [shape: f32[2,128,128], index: 0, kind: input, shape index: {}]
  %s1 = inlined_call_operand.hbm [shape: f32[128,128], index: 1, kind: input, shape index: {}]
  %s2 = inlined_call_operand.hbm [shape: f32[128,256], index: 2, kind: input, shape index: {}]
  %s3 = inlined_call_operand.hbm [shape: f32[2,128,128], index: 3, kind: output, shape index: {0}]
  %s4 = inlined_call_operand.vmem [shape: f32[2,2,128,64], index: 4, kind: output, shape index: {1}]
  %s5 = inlined_call_operand.vmem [shape: f32[2,2,128,64], index: 5, kind: output, shape index: {2}]
  %6 = xla_tuple %s3, %s4, %s5
  %s7 = sld [smem:[#allocation0]]
  $region141: #{tpu_custom_call.1} parent=0
    _
  %s9 = ssub.s32 1, %s7
  %s10 = scalar_select 0, %s9, %s7
  $region1: #{tpu_custom_call.1} parent=0
    #allocation2 [shape = 'u8[65536]{0}', space=vmem, size = 0x10000, scoped, tag = 'input window, operand 0']
    #allocation3 [shape = 's32[2]{0}', space=sflag, size = 0x8, scoped, tag = 'scoped memory for tpu_custom_call.1']
    #allocation4 [shape = 's32[2]{0}', space=sflag, size = 0x8, scoped, tag = 'scoped memory for tpu_custom_call.1']
    #allocation5 [shape = 'u8[65536]{0}', space=vmem, size = 0x10000, scoped, tag = 'input window, operand 1, single buffered']
    #allocation6 [shape = 's32[1]{0}', space=sflag, size = 0x4, scoped, tag = 'scoped memory for tpu_custom_call.1']
    #allocation7 [shape = 'u8[131072]{0}', space=vmem, size = 0x20000, scoped, tag = 'input window, operand 2, single buffered']
    #allocation8 [shape = 'u8[65536]{0}', space=vmem, size = 0x10000, scoped, tag = 'output window, operand 0']
    #allocation9 [shape = 'u8[131072]{0}', space=vmem, size = 0x20000, scoped, tag = 'output window, operand 1']
    #allocation10 [shape = 'u8[131072]{0}', space=vmem, size = 0x20000, scoped, tag = 'output window, operand 2']
    %11 = vsyncpa [#allocation3], 0
    %s12 = scalar_lea.sflag [#allocation3], 1
    %13 = vsyncpa %s12, 0
    %14 = vsyncpa [#allocation6], 0
    %15 = vsyncpa [#allocation4], 0
    %s16 = scalar_lea.sflag [#allocation4], 1
    %17 = vsyncpa %s16, 0
    loop: start=0, step=1, limit=6
    $region2: #{tpu_custom_call.1} parent=1 // loop_pre_header
      _
    $region3: #{tpu_custom_call.1} parent=1 // loop_header
      %s19 = sphi 0, %s23
      %p20 = scmp.ge.s32.totalorder %s19, 6
      %s26 = sphi 0, %s38
      %s27 = sphi 0, %s34
      %s28 = sphi 0, %s26
      %s29 = sphi 0, %s27
      %s30 = sphi 0, %s28
      %s31 = sphi 0, %s29
      %s43 = sphi 0, %s45
      %s46 = sphi 0, %s43
      %s47 = sphi 0, %s46
      %s63 = sphi 0, %s47
      %s67 = sphi 0, %s67
      %s69 = sphi 0, %s67
      %s70 = sphi 0, %s69
      %s84 = sphi 0, %s70
      %s88 = sphi 0, %s88
      %s90 = sphi 0, %s88
      %s91 = sphi 0, %s90
      %s105 = sphi 0, %s91
      %s113 = sphi 0, %s115
      %s116 = sphi 0, %s113
      %s117 = sphi 0, %s116
      %s133 = sphi 0, %s117
      %s141 = sphi 0, %s143
      %s144 = sphi 0, %s141
      %s145 = sphi 0, %s144
      %s161 = sphi 0, %s145
      %s169 = sphi 0, %s171
      %s172 = sphi 0, %s169
      %s173 = sphi 0, %s172
      %s189 = sphi 0, %s173
    $region4: #{tpu_custom_call.1} parent=1 // loop_header_branch
      %22 = sbr.rel (%p20) target = $region8
    $region5: #{tpu_custom_call.1} parent=1 // loop_body
      %s24 = ssub.s32 %s19, 1
      %s25 = ssub.s32 %s19, 2
      %s32 = sadd.s32 1, %s27
      %p33 = scmp.ge.s32.totalorder %s32, 2
      %s34 = scalar_select %p33, 0, %s32
      %s35 = sadd.s32 1, %s26
      %s36 = scalar_select %p33, %s35, %s26
      %p37 = scmp.ge.s32.totalorder %s36, 2
      %s38 = scalar_select %p37, 0, %s36
      %s39 = ssub.s32 %s26, %s38
      %s40 = ssub.s32 %s27, %s34
      %s41 = sor.u32 %s39, %s40
      %p42 = scmp.eq.s32.totalorder %s41, 0
      %s44 = sadd.s32 %s43, 1
      %s45 = scalar_select %p42, %s43, %s44
      %p48 = pneg %p42
      %p49 = scmp.eq.s32.totalorder %s19, 3
      %p50 = por %p48, %p49
      %p51 = scmp.ne.s32.totalorder %s43, %s46
      %p52 = scmp.eq.s32.totalorder %s19, 0
      %p53 = por %p51, %p52
      %p54 = scmp.ne.s32.totalorder %s43, %s46
      %p55 = scmp.eq.s32.totalorder %s24, 3
      %p56 = por %p54, %p55
      %p57 = scmp.ne.s32.totalorder %s46, %s47
      %p58 = scmp.eq.s32.totalorder %s24, 0
      %p59 = por %p57, %p58
      %p60 = scmp.ne.s32.totalorder %s46, %s47
      %p61 = scmp.eq.s32.totalorder %s25, 3
      %p62 = por %p60, %p61
      %p64 = scmp.ne.s32.totalorder %s47, %s63
      %p65 = scmp.eq.s32.totalorder %s25, 0
      %p66 = por %p64, %p65
      %s68 = sadd.s32 %s67, 1
      %p71 = scmp.eq.s32.totalorder %s19, 3
      %p72 = scmp.ne.s32.totalorder %s67, %s69
      %p73 = scmp.eq.s32.totalorder %s19, 0
      %p74 = por %p72, %p73
      %p75 = scmp.ne.s32.totalorder %s67, %s69
      %p76 = scmp.eq.s32.totalorder %s24, 3
      %p77 = por %p75, %p76
      %p78 = scmp.ne.s32.totalorder %s69, %s70
      %p79 = scmp.eq.s32.totalorder %s24, 0
      %p80 = por %p78, %p79
      %p81 = scmp.ne.s32.totalorder %s69, %s70
      %p82 = scmp.eq.s32.totalorder %s25, 3
      %p83 = por %p81, %p82
      %p85 = scmp.ne.s32.totalorder %s70, %s84
      %p86 = scmp.eq.s32.totalorder %s25, 0
      %p87 = por %p85, %p86
      %s89 = sadd.s32 %s88, 1
      %p92 = scmp.eq.s32.totalorder %s19, 3
      %p93 = scmp.ne.s32.totalorder %s88, %s90
      %p94 = scmp.eq.s32.totalorder %s19, 0
      %p95 = por %p93, %p94
      %p96 = scmp.ne.s32.totalorder %s88, %s90
      %p97 = scmp.eq.s32.totalorder %s24, 3
      %p98 = por %p96, %p97
      %p99 = scmp.ne.s32.totalorder %s90, %s91
      %p100 = scmp.eq.s32.totalorder %s24, 0
      %p101 = por %p99, %p100
      %p102 = scmp.ne.s32.totalorder %s90, %s91
      %p103 = scmp.eq.s32.totalorder %s25, 3
      %p104 = por %p102, %p103
      %p106 = scmp.ne.s32.totalorder %s91, %s105
      %p107 = scmp.eq.s32.totalorder %s25, 0
      %p108 = por %p106, %p107
      %s109 = ssub.s32 %s26, %s38
      %s110 = ssub.s32 %s27, %s34
      %s111 = sor.u32 %s109, %s110
      %p112 = scmp.eq.s32.totalorder %s111, 0
      %s114 = sadd.s32 %s113, 1
      %s115 = scalar_select %p112, %s113, %s114
      %p118 = pneg %p112
      %p119 = scmp.eq.s32.totalorder %s19, 3
      %p120 = por %p118, %p119
      %p121 = scmp.ne.s32.totalorder %s113, %s116
      %p122 = scmp.eq.s32.totalorder %s19, 0
      %p123 = por %p121, %p122
      %p124 = scmp.ne.s32.totalorder %s113, %s116
      %p125 = scmp.eq.s32.totalorder %s24, 3
      %p126 = por %p124, %p125
      %p127 = scmp.ne.s32.totalorder %s116, %s117
      %p128 = scmp.eq.s32.totalorder %s24, 0
      %p129 = por %p127, %p128
      %p130 = scmp.ne.s32.totalorder %s116, %s117
      %p131 = scmp.eq.s32.totalorder %s25, 3
      %p132 = por %p130, %p131
      %p134 = scmp.ne.s32.totalorder %s117, %s133
      %p135 = scmp.eq.s32.totalorder %s25, 0
      %p136 = por %p134, %p135
      %s137 = ssub.s32 %s26, %s38
      %s138 = ssub.s32 %s27, %s34
      %s139 = sor.u32 %s137, %s138
      %p140 = scmp.eq.s32.totalorder %s139, 0
      %s142 = sadd.s32 %s141, 1
      %s143 = scalar_select %p140, %s141, %s142
      %p146 = pneg %p140
      %p147 = scmp.eq.s32.totalorder %s19, 3
      %p148 = por %p146, %p147
      %p149 = scmp.ne.s32.totalorder %s141, %s144
      %p150 = scmp.eq.s32.totalorder %s19, 0
      %p151 = por %p149, %p150
      %p152 = scmp.ne.s32.totalorder %s141, %s144
      %p153 = scmp.eq.s32.totalorder %s24, 3
      %p154 = por %p152, %p153
      %p155 = scmp.ne.s32.totalorder %s144, %s145
      %p156 = scmp.eq.s32.totalorder %s24, 0
      %p157 = por %p155, %p156
      %p158 = scmp.ne.s32.totalorder %s144, %s145
      %p159 = scmp.eq.s32.totalorder %s25, 3
      %p160 = por %p158, %p159
      %p162 = scmp.ne.s32.totalorder %s145, %s161
      %p163 = scmp.eq.s32.totalorder %s25, 0
      %p164 = por %p162, %p163
      %s165 = ssub.s32 %s26, %s38
      %s166 = ssub.s32 %s27, %s34
      %s167 = sor.u32 %s165, %s166
      %p168 = scmp.eq.s32.totalorder %s167, 0
      %s170 = sadd.s32 %s169, 1
      %s171 = scalar_select %p168, %s169, %s170
      %p174 = pneg %p168
      %p175 = scmp.eq.s32.totalorder %s19, 3
      %p176 = por %p174, %p175
      %p177 = scmp.ne.s32.totalorder %s169, %s172
      %p178 = scmp.eq.s32.totalorder %s19, 0
      %p179 = por %p177, %p178
      %p180 = scmp.ne.s32.totalorder %s169, %s172
      %p181 = scmp.eq.s32.totalorder %s24, 3
      %p182 = por %p180, %p181
      %p183 = scmp.ne.s32.totalorder %s172, %s173
      %p184 = scmp.eq.s32.totalorder %s24, 0
      %p185 = por %p183, %p184
      %p186 = scmp.ne.s32.totalorder %s172, %s173
      %p187 = scmp.eq.s32.totalorder %s25, 3
      %p188 = por %p186, %p187
      %p190 = scmp.ne.s32.totalorder %s173, %s189
      %p191 = scmp.eq.s32.totalorder %s25, 0
      %p192 = por %p190, %p191
      %p193 = scmp.le.s32.totalorder 1, %s19
      %p194 = scmp.lt.s32.totalorder %s19, 5
      %p195 = pnand %p193, %p194
      %p196 = pneg %p195
      // Predicated region
      $region9: #{tpu_custom_call.1} parent=5 // pred_check
        _
      $region10: #{tpu_custom_call.1} parent=5 // pred_check_branch
        %198 = sbr.rel (%p195) target = $region12
      $region11: #{tpu_custom_call.1} parent=5 // pred_region
        %s199 = ssub.s32 %s19, 1
        // Predicated region
        $region13: #{tpu_custom_call.1} parent=11 // pred_check
          %p200 = pneg %p80
        $region14: #{tpu_custom_call.1} parent=11 // pred_check_branch
          %202 = sbr.rel (%p200) target = $region16
        $region15: #{tpu_custom_call.1} parent=11 // pred_region
          %204 = vsyncadd [#allocation6], 0
          %s205 = sshll.u32 %s1, 4
          %s206 = int_to_ptr.hbm [resolvable:$true] %s205
          %s207 = sshll.u32 [#allocation5], 4
          %s208 = int_to_ptr.vmem [resolvable:$true] %s207
          %213 = dma.hbm_to_vmem [thread:$0]  %s206, 2048, %s208, [#allocation6], 128, 128, 8
        $region16: #{tpu_custom_call.1} parent=11 // pred_fallthru
          _
        // Predicated region
        $region17: #{tpu_custom_call.1} parent=11 // pred_check
          %p214 = pneg %p101
        $region18: #{tpu_custom_call.1} parent=11 // pred_check_branch
          %216 = sbr.rel (%p214) target = $region20
        $region19: #{tpu_custom_call.1} parent=11 // pred_region
          %218 = vsyncadd [#allocation6], 0
          %s219 = sshll.u32 %s2, 4
          %s220 = int_to_ptr.hbm [resolvable:$true] %s219
          %s221 = sshll.u32 [#allocation7], 4
          %s222 = int_to_ptr.vmem [resolvable:$true] %s221
          %227 = dma.hbm_to_vmem [thread:$0]  %s220, 4096, %s222, [#allocation6], 256, 256, 16
        $region20: #{tpu_custom_call.1} parent=11 // pred_fallthru
          _
      $region12: #{tpu_custom_call.1} parent=5 // pred_fallthru
        _
      %p228 = scmp.lt.s32.totalorder %s19, 4
      // Predicated region
      $region21: #{tpu_custom_call.1} parent=5 // pred_check
        %p229 = pneg %p228
      $region22: #{tpu_custom_call.1} parent=5 // pred_check_branch
        %231 = sbr.rel (%p229) target = $region24
      $region23: #{tpu_custom_call.1} parent=5 // pred_region
        // Predicated region
        $region25: #{tpu_custom_call.1} parent=23 // pred_check
          %p232 = pneg %p53
        $region26: #{tpu_custom_call.1} parent=23 // pred_check_branch
          %234 = sbr.rel (%p232) target = $region28
        $region27: #{tpu_custom_call.1} parent=23 // pred_region
          %s235 = sand.u32 %s43, 1
          %s236 = scalar_lea.sflag [#allocation3], %s235
          %s237 = sand.u32 %s43, 1
          %s238 = smul.addr %s237, 64
          %s239 = scalar_lea.vmem [#allocation2], %s238
          %s240 = smul.u32 8, %s27
          %242 = vsyncadd %s236, 0
          %s243 = smul.addr %s26, 16
          %s244 = sadd.s32 %s240, %s243
          %s245 = smul.addr %s244, 8
          %s246 = scalar_lea.hbm %s0, %s245
          %s247 = sshll.u32 %s246, 4
          %s248 = int_to_ptr.hbm [resolvable:$true] %s247
          %s249 = sshll.u32 %s239, 4
          %s250 = int_to_ptr.vmem [resolvable:$true] %s249
          %255 = dma.hbm_to_vmem [thread:$0]  %s248, 1024, %s250, %s236, 128, 128, 8
        $region28: #{tpu_custom_call.1} parent=23 // pred_fallthru
          _
      $region24: #{tpu_custom_call.1} parent=5 // pred_fallthru
        _
      %p256 = scmp.le.s32.totalorder 1, %s19
      %p257 = scmp.lt.s32.totalorder %s19, 5
      %p258 = pnand %p256, %p257
      %p259 = pneg %p258
      // Predicated region
      $region29: #{tpu_custom_call.1} parent=5 // pred_check
        _
      $region30: #{tpu_custom_call.1} parent=5 // pred_check_branch
        %261 = sbr.rel (%p258) target = $region32
      $region31: #{tpu_custom_call.1} parent=5 // pred_region
        %s262 = ssub.s32 %s19, 1
        %s263 = sand.u32 %s46, 1
        %s264 = scalar_lea.sflag [#allocation3], %s263
        %s265 = sand.u32 %s46, 1
        %s266 = smul.addr %s265, 64
        %s267 = scalar_lea.vmem [#allocation2], %s266
        // Predicated region
        $region33: #{tpu_custom_call.1} parent=31 // pred_check
          %p268 = pneg %p59
        $region34: #{tpu_custom_call.1} parent=31 // pred_check_branch
          %270 = sbr.rel (%p268) target = $region36
        $region35: #{tpu_custom_call.1} parent=31 // pred_region
          %272 = dma.done %s264, 1024
        $region36: #{tpu_custom_call.1} parent=31 // pred_fallthru
          _
        // Predicated region
        $region37: #{tpu_custom_call.1} parent=31 // pred_check
          %p273 = pneg %p80
        $region38: #{tpu_custom_call.1} parent=31 // pred_check_branch
          %275 = sbr.rel (%p273) target = $region40
        $region39: #{tpu_custom_call.1} parent=31 // pred_region
          %277 = dma.done [#allocation6], 2048
        $region40: #{tpu_custom_call.1} parent=31 // pred_fallthru
          _
        // Predicated region
        $region41: #{tpu_custom_call.1} parent=31 // pred_check
          %p278 = pneg %p101
        $region42: #{tpu_custom_call.1} parent=31 // pred_check_branch
          %280 = sbr.rel (%p278) target = $region44
        $region43: #{tpu_custom_call.1} parent=31 // pred_region
          %282 = dma.done [#allocation6], 4096
        $region44: #{tpu_custom_call.1} parent=31 // pred_fallthru
          _
        %s283 = sand.u32 %s46, 1
        %s284 = scalar_lea.sflag [#allocation3], %s283
        %s285 = sand.u32 %s46, 1
        %s286 = smul.addr %s285, 64
        %s287 = scalar_lea.vmem [#allocation2], %s286
        %p288 = pneg %p59
        %p289 = pneg %p56
        %p290 = pneg %p80
        %p291 = pneg %p77
        %p292 = pneg %p101
        %p293 = pneg %p98
        %p294 = pneg %p129
        %p295 = pneg %p126
        %s296 = sand.u32 %s116, 1
        %s297 = scalar_lea.sflag [#allocation4], %s296
        %s298 = sand.u32 %s116, 1
        %s299 = smul.addr %s298, 64
        %s300 = scalar_lea.vmem [#allocation8], %s299
        %p301 = pneg %p157
        %p302 = pneg %p154
        %s303 = sand.u32 %s144, 1
        %s304 = sand.u32 %s144, 1
        %s305 = smul.addr %s304, 128
        %s306 = scalar_lea.vmem [#allocation9], %s305
        %p307 = pneg %p185
        %p308 = pneg %p182
        %s309 = sand.u32 %s172, 1
        %s310 = sand.u32 %s172, 1
        %s311 = smul.addr %s310, 128
        %s312 = scalar_lea.vmem [#allocation10], %s311
        %s313 = smul.u32 8, %s29
        %s314 = smul.u32 8, %s29
        %s315 = smul.u32 8, %s29
        %s316 = smul.u32 8, %s29
        %v317 = vld [vmem:[%s267] sm:$0xff]
        %v318 = vld [vmem:[%s267 + $0x8] sm:$0xff]
        %v319 = vld [vmem:[%s267 + $0x10] sm:$0xff]
        %v320 = vld [vmem:[%s267 + $0x18] sm:$0xff]
        %v321 = vld [vmem:[%s267 + $0x20] sm:$0xff]
        %v322 = vld [vmem:[%s267 + $0x28] sm:$0xff]
        %v323 = vld [vmem:[%s267 + $0x30] sm:$0xff]
        %v324 = vld [vmem:[%s267 + $0x38] sm:$0xff]
        %v325 = vld [vmem:[#allocation5] sm:$0xff]
        %v326 = vld [vmem:[#allocation5 + $0x8] sm:$0xff]
        %v327 = vld [vmem:[#allocation5 + $0x10] sm:$0xff]
        %v328 = vld [vmem:[#allocation5 + $0x18] sm:$0xff]
        %v329 = vld [vmem:[#allocation5 + $0x20] sm:$0xff]
        %v330 = vld [vmem:[#allocation5 + $0x28] sm:$0xff]
        %v331 = vld [vmem:[#allocation5 + $0x30] sm:$0xff]
        %v332 = vld [vmem:[#allocation5 + $0x38] sm:$0xff]
        %v333 = vld [vmem:[#allocation5 + $0x40] sm:$0xff]
        %v334 = vld [vmem:[#allocation5 + $0x48] sm:$0xff]
        %v335 = vld [vmem:[#allocation5 + $0x50] sm:$0xff]
        %v336 = vld [vmem:[#allocation5 + $0x58] sm:$0xff]
        %v337 = vld [vmem:[#allocation5 + $0x60] sm:$0xff]
        %v338 = vld [vmem:[#allocation5 + $0x68] sm:$0xff]
        %v339 = vld [vmem:[#allocation5 + $0x70] sm:$0xff]
        %v340 = vld [vmem:[#allocation5 + $0x78] sm:$0xff]
        %341 = vmatpush.msra.mxu0 %v340
        %342 = vmatpush.msra.mxu0 %v339
        %343 = vmatpush.msra.mxu0 %v338
        %344 = vmatpush.msra.mxu0 %v337
        %345 = vmatpush.msra.mxu0 %v336
        %346 = vmatpush.msra.mxu0 %v335
        %347 = vmatpush.msra.mxu0 %v334
        %348 = vmatpush.msra.mxu0 %v333
        %349 = vmatpush.msra.mxu0 %v332
        %350 = vmatpush.msra.mxu0 %v331
        %351 = vmatpush.msra.mxu0 %v330
        %352 = vmatpush.msra.mxu0 %v329
        %353 = vmatpush.msra.mxu0 %v328
        %354 = vmatpush.msra.mxu0 %v327
        %355 = vmatpush.msra.mxu0 %v326
        %356 = vmatpush.msra.mxu0 %v325
        %357 = vmatmul.f32.gmra.mxu0 %v317
        %v358 = vpop.f32.mrf.mxu0
        %v359 = vadd.f32 0.0, %v358
        %360 = vmatmul.f32.gmra.mxu0 %v318
        %v361 = vpop.f32.mrf.mxu0
        %v362 = vadd.f32 0.0, %v361
        %363 = vmatmul.f32.gmra.mxu0 %v319
        %v364 = vpop.f32.mrf.mxu0
        %v365 = vadd.f32 0.0, %v364
        %366 = vmatmul.f32.gmra.mxu0 %v320
        %v367 = vpop.f32.mrf.mxu0
        %v368 = vadd.f32 0.0, %v367
        %369 = vmatmul.f32.gmra.mxu0 %v321
        %v370 = vpop.f32.mrf.mxu0
        %v371 = vadd.f32 0.0, %v370
        %372 = vmatmul.f32.gmra.mxu0 %v322
        %v373 = vpop.f32.mrf.mxu0
        %v374 = vadd.f32 0.0, %v373
        %375 = vmatmul.f32.gmra.mxu0 %v323
        %v376 = vpop.f32.mrf.mxu0
        %v377 = vadd.f32 0.0, %v376
        %378 = vmatmul.f32.gmra.mxu0 %v324
        %v379 = vpop.f32.mrf.mxu0
        %v380 = vadd.f32 0.0, %v379
        %381 = vdwg.mxu0
        %v382 = vld [vmem:[#allocation7] sm:$0xff]
        %v383 = vld [vmem:[#allocation7 + $0x8] sm:$0xff]
        %v384 = vld [vmem:[#allocation7 + $0x10] sm:$0xff]
        %v385 = vld [vmem:[#allocation7 + $0x18] sm:$0xff]
        %v386 = vld [vmem:[#allocation7 + $0x20] sm:$0xff]
        %v387 = vld [vmem:[#allocation7 + $0x28] sm:$0xff]
        %v388 = vld [vmem:[#allocation7 + $0x30] sm:$0xff]
        %v389 = vld [vmem:[#allocation7 + $0x38] sm:$0xff]
        %v390 = vld [vmem:[#allocation7 + $0x40] sm:$0xff]
        %v391 = vld [vmem:[#allocation7 + $0x48] sm:$0xff]
        %v392 = vld [vmem:[#allocation7 + $0x50] sm:$0xff]
        %v393 = vld [vmem:[#allocation7 + $0x58] sm:$0xff]
        %v394 = vld [vmem:[#allocation7 + $0x60] sm:$0xff]
        %v395 = vld [vmem:[#allocation7 + $0x68] sm:$0xff]
        %v396 = vld [vmem:[#allocation7 + $0x70] sm:$0xff]
        %v397 = vld [vmem:[#allocation7 + $0x78] sm:$0xff]
        %v398 = vld [vmem:[#allocation7 + $0x80] sm:$0xff]
        %v399 = vld [vmem:[#allocation7 + $0x88] sm:$0xff]
        %v400 = vld [vmem:[#allocation7 + $0x90] sm:$0xff]
        %v401 = vld [vmem:[#allocation7 + $0x98] sm:$0xff]
        %v402 = vld [vmem:[#allocation7 + $0xa0] sm:$0xff]
        %v403 = vld [vmem:[#allocation7 + $0xa8] sm:$0xff]
        %v404 = vld [vmem:[#allocation7 + $0xb0] sm:$0xff]
        %v405 = vld [vmem:[#allocation7 + $0xb8] sm:$0xff]
        %v406 = vld [vmem:[#allocation7 + $0xc0] sm:$0xff]
        %v407 = vld [vmem:[#allocation7 + $0xc8] sm:$0xff]
        %v408 = vld [vmem:[#allocation7 + $0xd0] sm:$0xff]
        %v409 = vld [vmem:[#allocation7 + $0xd8] sm:$0xff]
        %v410 = vld [vmem:[#allocation7 + $0xe0] sm:$0xff]
        %v411 = vld [vmem:[#allocation7 + $0xe8] sm:$0xff]
        %v412 = vld [vmem:[#allocation7 + $0xf0] sm:$0xff]
        %v413 = vld [vmem:[#allocation7 + $0xf8] sm:$0xff]
        %414 = vmatpush.msra.mxu0 %v412
        %415 = vmatpush.msra.mxu0 %v410
        %416 = vmatpush.msra.mxu0 %v408
        %417 = vmatpush.msra.mxu0 %v406
        %418 = vmatpush.msra.mxu0 %v404
        %419 = vmatpush.msra.mxu0 %v402
        %420 = vmatpush.msra.mxu0 %v400
        %421 = vmatpush.msra.mxu0 %v398
        %422 = vmatpush.msra.mxu0 %v396
        %423 = vmatpush.msra.mxu0 %v394
        %424 = vmatpush.msra.mxu0 %v392
        %425 = vmatpush.msra.mxu0 %v390
        %426 = vmatpush.msra.mxu0 %v388
        %427 = vmatpush.msra.mxu0 %v386
        %428 = vmatpush.msra.mxu0 %v384
        %429 = vmatpush.msra.mxu0 %v382
        %430 = vmatmul.f32.gmra.mxu0 %v359
        %v431 = vpop.f32.mrf.mxu0
        %v432 = vadd.f32 0.0, %v431
        %433 = vmatmul.f32.gmra.mxu0 %v362
        %v434 = vpop.f32.mrf.mxu0
        %v435 = vadd.f32 0.0, %v434
        %436 = vmatmul.f32.gmra.mxu0 %v365
        %v437 = vpop.f32.mrf.mxu0
        %v438 = vadd.f32 0.0, %v437
        %439 = vmatmul.f32.gmra.mxu0 %v368
        %v440 = vpop.f32.mrf.mxu0
        %v441 = vadd.f32 0.0, %v440
        %442 = vmatmul.f32.gmra.mxu0 %v371
        %v443 = vpop.f32.mrf.mxu0
        %v444 = vadd.f32 0.0, %v443
        %445 = vmatmul.f32.gmra.mxu0 %v374
        %v446 = vpop.f32.mrf.mxu0
        %v447 = vadd.f32 0.0, %v446
        %448 = vmatmul.f32.gmra.mxu0 %v377
        %v449 = vpop.f32.mrf.mxu0
        %v450 = vadd.f32 0.0, %v449
        %451 = vmatmul.f32.gmra.mxu0 %v380
        %v452 = vpop.f32.mrf.mxu0
        %v453 = vadd.f32 0.0, %v452
        %454 = vdwg.mxu0
        %455 = vmatpush.msra.mxu0 %v413
        %456 = vmatpush.msra.mxu0 %v411
        %457 = vmatpush.msra.mxu0 %v409
        %458 = vmatpush.msra.mxu0 %v407
        %459 = vmatpush.msra.mxu0 %v405
        %460 = vmatpush.msra.mxu0 %v403
        %461 = vmatpush.msra.mxu0 %v401
        %462 = vmatpush.msra.mxu0 %v399
        %463 = vmatpush.msra.mxu0 %v397
        %464 = vmatpush.msra.mxu0 %v395
        %465 = vmatpush.msra.mxu0 %v393
        %466 = vmatpush.msra.mxu0 %v391
        %467 = vmatpush.msra.mxu0 %v389
        %468 = vmatpush.msra.mxu0 %v387
        %469 = vmatpush.msra.mxu0 %v385
        %470 = vmatpush.msra.mxu0 %v383
        %471 = vmatmul.f32.gmra.mxu0 %v359
        %v472 = vpop.f32.mrf.mxu0
        %v473 = vadd.f32 0.0, %v472
        %474 = vmatmul.f32.gmra.mxu0 %v362
        %v475 = vpop.f32.mrf.mxu0
        %v476 = vadd.f32 0.0, %v475
        %477 = vmatmul.f32.gmra.mxu0 %v365
        %v478 = vpop.f32.mrf.mxu0
        %v479 = vadd.f32 0.0, %v478
        %480 = vmatmul.f32.gmra.mxu0 %v368
        %v481 = vpop.f32.mrf.mxu0
        %v482 = vadd.f32 0.0, %v481
        %483 = vmatmul.f32.gmra.mxu0 %v371
        %v484 = vpop.f32.mrf.mxu0
        %v485 = vadd.f32 0.0, %v484
        %486 = vmatmul.f32.gmra.mxu0 %v374
        %v487 = vpop.f32.mrf.mxu0
        %v488 = vadd.f32 0.0, %v487
        %489 = vmatmul.f32.gmra.mxu0 %v377
        %v490 = vpop.f32.mrf.mxu0
        %v491 = vadd.f32 0.0, %v490
        %492 = vmatmul.f32.gmra.mxu0 %v380
        %v493 = vpop.f32.mrf.mxu0
        %v494 = vadd.f32 0.0, %v493
        %495 = vdwg.mxu0
        %496 = vst [vmem:[%s300] sm:$0xff] %v359
        %497 = vst [vmem:[%s300 + $0x8] sm:$0xff] %v362
        %498 = vst [vmem:[%s300 + $0x10] sm:$0xff] %v365
        %499 = vst [vmem:[%s300 + $0x18] sm:$0xff] %v368
        %500 = vst [vmem:[%s300 + $0x20] sm:$0xff] %v371
        %501 = vst [vmem:[%s300 + $0x28] sm:$0xff] %v374
        %502 = vst [vmem:[%s300 + $0x30] sm:$0xff] %v377
        %503 = vst [vmem:[%s300 + $0x38] sm:$0xff] %v380
        %vm504 = vcmask 523264
        %505 = vst.msk [vmem:[%s306] sm:$0xff] %vm504, %v432
        %506 = vst.msk [vmem:[%s306 + $0x8] sm:$0xff] %vm504, %v435
        %507 = vst.msk [vmem:[%s306 + $0x10] sm:$0xff] %vm504, %v438
        %508 = vst.msk [vmem:[%s306 + $0x18] sm:$0xff] %vm504, %v441
        %509 = vst.msk [vmem:[%s306 + $0x20] sm:$0xff] %vm504, %v444
        %510 = vst.msk [vmem:[%s306 + $0x28] sm:$0xff] %vm504, %v447
        %511 = vst.msk [vmem:[%s306 + $0x30] sm:$0xff] %vm504, %v450
        %512 = vst.msk [vmem:[%s306 + $0x38] sm:$0xff] %vm504, %v453
        %513 = vst.msk [vmem:[%s312] sm:$0xff] %vm504, %v473
        %514 = vst.msk [vmem:[%s312 + $0x8] sm:$0xff] %vm504, %v476
        %515 = vst.msk [vmem:[%s312 + $0x10] sm:$0xff] %vm504, %v479
        %516 = vst.msk [vmem:[%s312 + $0x18] sm:$0xff] %vm504, %v482
        %517 = vst.msk [vmem:[%s312 + $0x20] sm:$0xff] %vm504, %v485
        %518 = vst.msk [vmem:[%s312 + $0x28] sm:$0xff] %vm504, %v488
        %519 = vst.msk [vmem:[%s312 + $0x30] sm:$0xff] %vm504, %v491
        %520 = vst.msk [vmem:[%s312 + $0x38] sm:$0xff] %vm504, %v494
        %529 = vrot.lane.b32.xlu0 %v432, 64
        %v530 = vpop.permute.xlu0 %529
        %531 = vrot.lane.b32.xlu0 %v435, 64
        %v532 = vpop.permute.xlu0 %531
        %533 = vrot.lane.b32.xlu0 %v438, 64
        %v534 = vpop.permute.xlu0 %533
        %535 = vrot.lane.b32.xlu0 %v441, 64
        %v536 = vpop.permute.xlu0 %535
        %537 = vrot.lane.b32.xlu0 %v444, 64
        %v538 = vpop.permute.xlu0 %537
        %539 = vrot.lane.b32.xlu0 %v447, 64
        %v540 = vpop.permute.xlu0 %539
        %541 = vrot.lane.b32.xlu0 %v450, 64
        %v542 = vpop.permute.xlu0 %541
        %543 = vrot.lane.b32.xlu0 %v453, 64
        %v544 = vpop.permute.xlu0 %543
        %s553 = scalar_lea.vmem %s306, 64 [#allocation9]
        %554 = vst.msk [vmem:[%s553] sm:$0xff] %vm504, %v530
        %555 = vst.msk [vmem:[%s553 + $0x8] sm:$0xff] %vm504, %v532
        %556 = vst.msk [vmem:[%s553 + $0x10] sm:$0xff] %vm504, %v534
        %557 = vst.msk [vmem:[%s553 + $0x18] sm:$0xff] %vm504, %v536
        %558 = vst.msk [vmem:[%s553 + $0x20] sm:$0xff] %vm504, %v538
        %559 = vst.msk [vmem:[%s553 + $0x28] sm:$0xff] %vm504, %v540
        %560 = vst.msk [vmem:[%s553 + $0x30] sm:$0xff] %vm504, %v542
        %561 = vst.msk [vmem:[%s553 + $0x38] sm:$0xff] %vm504, %v544
        %570 = vrot.lane.b32.xlu0 %v473, 64
        %v571 = vpop.permute.xlu0 %570
        %572 = vrot.lane.b32.xlu0 %v476, 64
        %v573 = vpop.permute.xlu0 %572
        %574 = vrot.lane.b32.xlu0 %v479, 64
        %v575 = vpop.permute.xlu0 %574
        %576 = vrot.lane.b32.xlu0 %v482, 64
        %v577 = vpop.permute.xlu0 %576
        %578 = vrot.lane.b32.xlu0 %v485, 64
        %v579 = vpop.permute.xlu0 %578
        %580 = vrot.lane.b32.xlu0 %v488, 64
        %v581 = vpop.permute.xlu0 %580
        %582 = vrot.lane.b32.xlu0 %v491, 64
        %v583 = vpop.permute.xlu0 %582
        %584 = vrot.lane.b32.xlu0 %v494, 64
        %v585 = vpop.permute.xlu0 %584
        %s594 = scalar_lea.vmem %s312, 64 [#allocation10]
        %595 = vst.msk [vmem:[%s594] sm:$0xff] %vm504, %v571
        %596 = vst.msk [vmem:[%s594 + $0x8] sm:$0xff] %vm504, %v573
        %597 = vst.msk [vmem:[%s594 + $0x10] sm:$0xff] %vm504, %v575
        %598 = vst.msk [vmem:[%s594 + $0x18] sm:$0xff] %vm504, %v577
        %599 = vst.msk [vmem:[%s594 + $0x20] sm:$0xff] %vm504, %v579
        %600 = vst.msk [vmem:[%s594 + $0x28] sm:$0xff] %vm504, %v581
        %601 = vst.msk [vmem:[%s594 + $0x30] sm:$0xff] %vm504, %v583
        %602 = vst.msk [vmem:[%s594 + $0x38] sm:$0xff] %vm504, %v585
        %s603 = sand.u32 %s116, 1
        %s604 = scalar_lea.sflag [#allocation4], %s603
        %s605 = sand.u32 %s116, 1
        %s606 = smul.addr %s605, 64
        %s607 = scalar_lea.vmem [#allocation8], %s606
        %s608 = sand.u32 %s144, 1
        %s609 = sand.u32 %s144, 1
        %s610 = smul.addr %s609, 128
        %s611 = scalar_lea.vmem [#allocation9], %s610
        %s612 = sand.u32 %s172, 1
        %s613 = sand.u32 %s172, 1
        %s614 = smul.addr %s613, 128
        %s615 = scalar_lea.vmem [#allocation10], %s614
        // Predicated region
        $region45: #{tpu_custom_call.1} parent=31 // pred_check
          %p616 = pneg %p126
        $region46: #{tpu_custom_call.1} parent=31 // pred_check_branch
          %618 = sbr.rel (%p616) target = $region48
        $region47: #{tpu_custom_call.1} parent=31 // pred_region
          %s619 = smul.u32 8, %s29
          %621 = vsyncadd %s604, 0
          %s622 = smul.addr %s28, 16
          %s623 = sadd.s32 %s619, %s622
          %s624 = smul.addr %s623, 8
          %s625 = scalar_lea.hbm %s3, %s624
          %s626 = sshll.u32 %s607, 4
          %s627 = int_to_ptr.vmem [resolvable:$true] %s626
          %s628 = sshll.u32 %s625, 4
          %s629 = int_to_ptr.hbm [resolvable:$true] %s628
          %634 = dma.vmem_to_hbm [thread:$0]  %s627, 1024, %s629, %s604, 128, 128, 8
        $region48: #{tpu_custom_call.1} parent=31 // pred_fallthru
          _
        // Predicated region
        $region49: #{tpu_custom_call.1} parent=31 // pred_check
          %p635 = pneg %p154
        $region50: #{tpu_custom_call.1} parent=31 // pred_check_branch
          %637 = sbr.rel (%p635) target = $region52
        $region51: #{tpu_custom_call.1} parent=31 // pred_region
          %s638 = smul.u32 8, %s29
          %s639 = smul.addr %s28, 32
          %s640 = sadd.s32 %s638, %s639
          %s641 = smul.addr %s640, 8
          %s642 = scalar_lea.vmem %s4, %s641
          // Predicated region
          $region53: #{tpu_custom_call.1} parent=51 // pred_check
            _
          $region54: #{tpu_custom_call.1} parent=51 // pred_check_branch
            %644 = sbr.rel (0) target = $region56
          $region55: #{tpu_custom_call.1} parent=51 // pred_region
            // Predicated region
            $region57: #{tpu_custom_call.1} parent=55 // pred_check
              _
            $region58: #{tpu_custom_call.1} parent=55 // pred_check_branch
              %646 = sbr.rel (0) target = $region60
            $region59: #{tpu_custom_call.1} parent=55 // pred_region
              // Predicated region
              $region72: #{tpu_custom_call.1} parent=59 // pred_check
                _
              $region73: #{tpu_custom_call.1} parent=59 // pred_check_branch
                %692 = sbr.rel (0) target = $region75
              $region74: #{tpu_custom_call.1} parent=59 // pred_region
                loop: start=0, step=1, limit=1
                $region76: #{tpu_custom_call.1} parent=74 // loop_pre_header
                  _
                $region77: #{tpu_custom_call.1} parent=74 // loop_header
                  %s694 = sphi 0, %s698
                  %p695 = scmp.ge.s32.totalorder %s694, 1
                  %s699 = sphi %s611, %s611
                  %s700 = sphi %s642, %s642
                $region78: #{tpu_custom_call.1} parent=74 // loop_header_branch
                  %697 = sbr.rel (%p695) target = $region82
                $region79: #{tpu_custom_call.1} parent=74 // loop_body
                  %v701 = vld [vmem:[%s699] sm:$0xff]
                  %702 = vst [vmem:[%s700] sm:$0xff] %v701
                  %v703 = vld [vmem:[%s699 + $0x8] sm:$0xff]
                  %704 = vst [vmem:[%s700 + $0x8] sm:$0xff] %v703
                  %v705 = vld [vmem:[%s699 + $0x10] sm:$0xff]
                  %706 = vst [vmem:[%s700 + $0x10] sm:$0xff] %v705
                  %v707 = vld [vmem:[%s699 + $0x18] sm:$0xff]
                  %708 = vst [vmem:[%s700 + $0x18] sm:$0xff] %v707
                  %v709 = vld [vmem:[%s699 + $0x20] sm:$0xff]
                  %710 = vst [vmem:[%s700 + $0x20] sm:$0xff] %v709
                  %v711 = vld [vmem:[%s699 + $0x28] sm:$0xff]
                  %712 = vst [vmem:[%s700 + $0x28] sm:$0xff] %v711
                  %v713 = vld [vmem:[%s699 + $0x30] sm:$0xff]
                  %714 = vst [vmem:[%s700 + $0x30] sm:$0xff] %v713
                  %v715 = vld [vmem:[%s699 + $0x38] sm:$0xff]
                  %716 = vst [vmem:[%s700 + $0x38] sm:$0xff] %v715
                  %v717 = vld [vmem:[%s699 + $0x40] sm:$0xff]
                  %718 = vst [vmem:[%s700 + $0x80] sm:$0xff] %v717
                  %v719 = vld [vmem:[%s699 + $0x48] sm:$0xff]
                  %720 = vst [vmem:[%s700 + $0x88] sm:$0xff] %v719
                  %v721 = vld [vmem:[%s699 + $0x50] sm:$0xff]
                  %722 = vst [vmem:[%s700 + $0x90] sm:$0xff] %v721
                  %v723 = vld [vmem:[%s699 + $0x58] sm:$0xff]
                  %724 = vst [vmem:[%s700 + $0x98] sm:$0xff] %v723
                  %v725 = vld [vmem:[%s699 + $0x60] sm:$0xff]
                  %726 = vst [vmem:[%s700 + $0xa0] sm:$0xff] %v725
                  %v727 = vld [vmem:[%s699 + $0x68] sm:$0xff]
                  %728 = vst [vmem:[%s700 + $0xa8] sm:$0xff] %v727
                  %v729 = vld [vmem:[%s699 + $0x70] sm:$0xff]
                  %730 = vst [vmem:[%s700 + $0xb0] sm:$0xff] %v729
                  %v731 = vld [vmem:[%s699 + $0x78] sm:$0xff]
                  %732 = vst [vmem:[%s700 + $0xb8] sm:$0xff] %v731
                $region80: #{tpu_custom_call.1} parent=74 // loop_footer
                  %s698 = sadd.s32 1, %s694
                $region81: #{tpu_custom_call.1} parent=74 // loop_footer_branch
                  %693 = sbr.rel target = $region77
                $region82: #{tpu_custom_call.1} parent=74 // loop_exit
                  _
              $region75: #{tpu_custom_call.1} parent=59 // pred_fallthru
                _
              // Predicated region
              $region83: #{tpu_custom_call.1} parent=59 // pred_check
                _
              $region84: #{tpu_custom_call.1} parent=59 // pred_check_branch
                %734 = sbr.rel target = $region86
              $region85: #{tpu_custom_call.1} parent=59 // pred_region
                _
              $region86: #{tpu_custom_call.1} parent=59 // pred_fallthru
                _
            $region60: #{tpu_custom_call.1} parent=55 // pred_fallthru
              _
            // Predicated region
            $region61: #{tpu_custom_call.1} parent=55 // pred_check
              _
            $region62: #{tpu_custom_call.1} parent=55 // pred_check_branch
              %648 = sbr.rel target = $region64
            $region63: #{tpu_custom_call.1} parent=55 // pred_region
              %s650 = ssub.s32 256, 1
              loop: start=0, step=1, limit=1
              $region65: #{tpu_custom_call.1} parent=63 // loop_pre_header
                _
              $region66: #{tpu_custom_call.1} parent=63 // loop_header
                %s652 = sphi 0, %s656
                %p653 = scmp.ge.s32.totalorder %s652, 1
                %s657 = sphi %s611, %s611
                %s658 = sphi %s642, %s642
              $region67: #{tpu_custom_call.1} parent=63 // loop_header_branch
                %655 = sbr.rel (%p653) target = $region71
              $region68: #{tpu_custom_call.1} parent=63 // loop_body
                %v659 = vld [vmem:[%s657] sm:%s650]
                %660 = vst [vmem:[%s658] sm:%s650] %v659
                %v661 = vld [vmem:[%s657 + $0x8] sm:%s650]
                %662 = vst [vmem:[%s658 + $0x8] sm:%s650] %v661
                %v663 = vld [vmem:[%s657 + $0x10] sm:%s650]
                %664 = vst [vmem:[%s658 + $0x10] sm:%s650] %v663
                %v665 = vld [vmem:[%s657 + $0x18] sm:%s650]
                %666 = vst [vmem:[%s658 + $0x18] sm:%s650] %v665
                %v667 = vld [vmem:[%s657 + $0x20] sm:%s650]
                %668 = vst [vmem:[%s658 + $0x20] sm:%s650] %v667
                %v669 = vld [vmem:[%s657 + $0x28] sm:%s650]
                %670 = vst [vmem:[%s658 + $0x28] sm:%s650] %v669
                %v671 = vld [vmem:[%s657 + $0x30] sm:%s650]
                %672 = vst [vmem:[%s658 + $0x30] sm:%s650] %v671
                %v673 = vld [vmem:[%s657 + $0x38] sm:%s650]
                %674 = vst [vmem:[%s658 + $0x38] sm:%s650] %v673
                %v675 = vld [vmem:[%s657 + $0x40] sm:%s650]
                %676 = vst [vmem:[%s658 + $0x80] sm:%s650] %v675
                %v677 = vld [vmem:[%s657 + $0x48] sm:%s650]
                %678 = vst [vmem:[%s658 + $0x88] sm:%s650] %v677
                %v679 = vld [vmem:[%s657 + $0x50] sm:%s650]
                %680 = vst [vmem:[%s658 + $0x90] sm:%s650] %v679
                %v681 = vld [vmem:[%s657 + $0x58] sm:%s650]
                %682 = vst [vmem:[%s658 + $0x98] sm:%s650] %v681
                %v683 = vld [vmem:[%s657 + $0x60] sm:%s650]
                %684 = vst [vmem:[%s658 + $0xa0] sm:%s650] %v683
                %v685 = vld [vmem:[%s657 + $0x68] sm:%s650]
                %686 = vst [vmem:[%s658 + $0xa8] sm:%s650] %v685
                %v687 = vld [vmem:[%s657 + $0x70] sm:%s650]
                %688 = vst [vmem:[%s658 + $0xb0] sm:%s650] %v687
                %v689 = vld [vmem:[%s657 + $0x78] sm:%s650]
                %690 = vst [vmem:[%s658 + $0xb8] sm:%s650] %v689
              $region69: #{tpu_custom_call.1} parent=63 // loop_footer
                %s656 = sadd.s32 1, %s652
              $region70: #{tpu_custom_call.1} parent=63 // loop_footer_branch
                %651 = sbr.rel target = $region66
              $region71: #{tpu_custom_call.1} parent=63 // loop_exit
                _
            $region64: #{tpu_custom_call.1} parent=55 // pred_fallthru
              _
          $region56: #{tpu_custom_call.1} parent=51 // pred_fallthru
            _
          %735 = vnop
        $region52: #{tpu_custom_call.1} parent=31 // pred_fallthru
          _
        // Predicated region
        $region87: #{tpu_custom_call.1} parent=31 // pred_check
          %p736 = pneg %p182
        $region88: #{tpu_custom_call.1} parent=31 // pred_check_branch
          %738 = sbr.rel (%p736) target = $region90
        $region89: #{tpu_custom_call.1} parent=31 // pred_region
          %s739 = smul.u32 8, %s29
          %s740 = smul.addr %s28, 32
          %s741 = sadd.s32 %s739, %s740
          %s742 = smul.addr %s741, 8
          %s743 = scalar_lea.vmem %s5, %s742
          // Predicated region
          $region91: #{tpu_custom_call.1} parent=89 // pred_check
            _
          $region92: #{tpu_custom_call.1} parent=89 // pred_check_branch
            %745 = sbr.rel (0) target = $region94
          $region93: #{tpu_custom_call.1} parent=89 // pred_region
            // Predicated region
            $region95: #{tpu_custom_call.1} parent=93 // pred_check
              _
            $region96: #{tpu_custom_call.1} parent=93 // pred_check_branch
              %747 = sbr.rel (0) target = $region98
            $region97: #{tpu_custom_call.1} parent=93 // pred_region
              // Predicated region
              $region110: #{tpu_custom_call.1} parent=97 // pred_check
                _
              $region111: #{tpu_custom_call.1} parent=97 // pred_check_branch
                %793 = sbr.rel (0) target = $region113
              $region112: #{tpu_custom_call.1} parent=97 // pred_region
                loop: start=0, step=1, limit=1
                $region114: #{tpu_custom_call.1} parent=112 // loop_pre_header
                  _
                $region115: #{tpu_custom_call.1} parent=112 // loop_header
                  %s795 = sphi 0, %s799
                  %p796 = scmp.ge.s32.totalorder %s795, 1
                  %s800 = sphi %s615, %s615
                  %s801 = sphi %s743, %s743
                $region116: #{tpu_custom_call.1} parent=112 // loop_header_branch
                  %798 = sbr.rel (%p796) target = $region120
                $region117: #{tpu_custom_call.1} parent=112 // loop_body
                  %v802 = vld [vmem:[%s800] sm:$0xff]
                  %803 = vst [vmem:[%s801] sm:$0xff] %v802
                  %v804 = vld [vmem:[%s800 + $0x8] sm:$0xff]
                  %805 = vst [vmem:[%s801 + $0x8] sm:$0xff] %v804
                  %v806 = vld [vmem:[%s800 + $0x10] sm:$0xff]
                  %807 = vst [vmem:[%s801 + $0x10] sm:$0xff] %v806
                  %v808 = vld [vmem:[%s800 + $0x18] sm:$0xff]
                  %809 = vst [vmem:[%s801 + $0x18] sm:$0xff] %v808
                  %v810 = vld [vmem:[%s800 + $0x20] sm:$0xff]
                  %811 = vst [vmem:[%s801 + $0x20] sm:$0xff] %v810
                  %v812 = vld [vmem:[%s800 + $0x28] sm:$0xff]
                  %813 = vst [vmem:[%s801 + $0x28] sm:$0xff] %v812
                  %v814 = vld [vmem:[%s800 + $0x30] sm:$0xff]
                  %815 = vst [vmem:[%s801 + $0x30] sm:$0xff] %v814
                  %v816 = vld [vmem:[%s800 + $0x38] sm:$0xff]
                  %817 = vst [vmem:[%s801 + $0x38] sm:$0xff] %v816
                  %v818 = vld [vmem:[%s800 + $0x40] sm:$0xff]
                  %819 = vst [vmem:[%s801 + $0x80] sm:$0xff] %v818
                  %v820 = vld [vmem:[%s800 + $0x48] sm:$0xff]
                  %821 = vst [vmem:[%s801 + $0x88] sm:$0xff] %v820
                  %v822 = vld [vmem:[%s800 + $0x50] sm:$0xff]
                  %823 = vst [vmem:[%s801 + $0x90] sm:$0xff] %v822
                  %v824 = vld [vmem:[%s800 + $0x58] sm:$0xff]
                  %825 = vst [vmem:[%s801 + $0x98] sm:$0xff] %v824
                  %v826 = vld [vmem:[%s800 + $0x60] sm:$0xff]
                  %827 = vst [vmem:[%s801 + $0xa0] sm:$0xff] %v826
                  %v828 = vld [vmem:[%s800 + $0x68] sm:$0xff]
                  %829 = vst [vmem:[%s801 + $0xa8] sm:$0xff] %v828
                  %v830 = vld [vmem:[%s800 + $0x70] sm:$0xff]
                  %831 = vst [vmem:[%s801 + $0xb0] sm:$0xff] %v830
                  %v832 = vld [vmem:[%s800 + $0x78] sm:$0xff]
                  %833 = vst [vmem:[%s801 + $0xb8] sm:$0xff] %v832
                $region118: #{tpu_custom_call.1} parent=112 // loop_footer
                  %s799 = sadd.s32 1, %s795
                $region119: #{tpu_custom_call.1} parent=112 // loop_footer_branch
                  %794 = sbr.rel target = $region115
                $region120: #{tpu_custom_call.1} parent=112 // loop_exit
                  _
              $region113: #{tpu_custom_call.1} parent=97 // pred_fallthru
                _
              // Predicated region
              $region121: #{tpu_custom_call.1} parent=97 // pred_check
                _
              $region122: #{tpu_custom_call.1} parent=97 // pred_check_branch
                %835 = sbr.rel target = $region124
              $region123: #{tpu_custom_call.1} parent=97 // pred_region
                _
              $region124: #{tpu_custom_call.1} parent=97 // pred_fallthru
                _
            $region98: #{tpu_custom_call.1} parent=93 // pred_fallthru
              _
            // Predicated region
            $region99: #{tpu_custom_call.1} parent=93 // pred_check
              _
            $region100: #{tpu_custom_call.1} parent=93 // pred_check_branch
              %749 = sbr.rel target = $region102
            $region101: #{tpu_custom_call.1} parent=93 // pred_region
              %s751 = ssub.s32 256, 1
              loop: start=0, step=1, limit=1
              $region103: #{tpu_custom_call.1} parent=101 // loop_pre_header
                _
              $region104: #{tpu_custom_call.1} parent=101 // loop_header
                %s753 = sphi 0, %s757
                %p754 = scmp.ge.s32.totalorder %s753, 1
                %s758 = sphi %s615, %s615
                %s759 = sphi %s743, %s743
              $region105: #{tpu_custom_call.1} parent=101 // loop_header_branch
                %756 = sbr.rel (%p754) target = $region109
              $region106: #{tpu_custom_call.1} parent=101 // loop_body
                %v760 = vld [vmem:[%s758] sm:%s751]
                %761 = vst [vmem:[%s759] sm:%s751] %v760
                %v762 = vld [vmem:[%s758 + $0x8] sm:%s751]
                %763 = vst [vmem:[%s759 + $0x8] sm:%s751] %v762
                %v764 = vld [vmem:[%s758 + $0x10] sm:%s751]
                %765 = vst [vmem:[%s759 + $0x10] sm:%s751] %v764
                %v766 = vld [vmem:[%s758 + $0x18] sm:%s751]
                %767 = vst [vmem:[%s759 + $0x18] sm:%s751] %v766
                %v768 = vld [vmem:[%s758 + $0x20] sm:%s751]
                %769 = vst [vmem:[%s759 + $0x20] sm:%s751] %v768
                %v770 = vld [vmem:[%s758 + $0x28] sm:%s751]
                %771 = vst [vmem:[%s759 + $0x28] sm:%s751] %v770
                %v772 = vld [vmem:[%s758 + $0x30] sm:%s751]
                %773 = vst [vmem:[%s759 + $0x30] sm:%s751] %v772
                %v774 = vld [vmem:[%s758 + $0x38] sm:%s751]
                %775 = vst [vmem:[%s759 + $0x38] sm:%s751] %v774
                %v776 = vld [vmem:[%s758 + $0x40] sm:%s751]
                %777 = vst [vmem:[%s759 + $0x80] sm:%s751] %v776
                %v778 = vld [vmem:[%s758 + $0x48] sm:%s751]
                %779 = vst [vmem:[%s759 + $0x88] sm:%s751] %v778
                %v780 = vld [vmem:[%s758 + $0x50] sm:%s751]
                %781 = vst [vmem:[%s759 + $0x90] sm:%s751] %v780
                %v782 = vld [vmem:[%s758 + $0x58] sm:%s751]
                %783 = vst [vmem:[%s759 + $0x98] sm:%s751] %v782
                %v784 = vld [vmem:[%s758 + $0x60] sm:%s751]
                %785 = vst [vmem:[%s759 + $0xa0] sm:%s751] %v784
                %v786 = vld [vmem:[%s758 + $0x68] sm:%s751]
                %787 = vst [vmem:[%s759 + $0xa8] sm:%s751] %v786
                %v788 = vld [vmem:[%s758 + $0x70] sm:%s751]
                %789 = vst [vmem:[%s759 + $0xb0] sm:%s751] %v788
                %v790 = vld [vmem:[%s758 + $0x78] sm:%s751]
                %791 = vst [vmem:[%s759 + $0xb8] sm:%s751] %v790
              $region107: #{tpu_custom_call.1} parent=101 // loop_footer
                %s757 = sadd.s32 1, %s753
              $region108: #{tpu_custom_call.1} parent=101 // loop_footer_branch
                %752 = sbr.rel target = $region104
              $region109: #{tpu_custom_call.1} parent=101 // loop_exit
                _
            $region102: #{tpu_custom_call.1} parent=93 // pred_fallthru
              _
          $region94: #{tpu_custom_call.1} parent=89 // pred_fallthru
            _
          %836 = vnop
        $region90: #{tpu_custom_call.1} parent=31 // pred_fallthru
          _
      $region32: #{tpu_custom_call.1} parent=5 // pred_fallthru
        _
      %p837 = scmp.le.s32.totalorder 2, %s19
      // Predicated region
      $region125: #{tpu_custom_call.1} parent=5 // pred_check
        %p838 = pneg %p837
      $region126: #{tpu_custom_call.1} parent=5 // pred_check_branch
        %840 = sbr.rel (%p838) target = $region128
      $region127: #{tpu_custom_call.1} parent=5 // pred_region
        %s841 = ssub.s32 %s19, 2
        // Predicated region
        $region129: #{tpu_custom_call.1} parent=127 // pred_check
          %p842 = pneg %p132
        $region130: #{tpu_custom_call.1} parent=127 // pred_check_branch
          %844 = sbr.rel (%p842) target = $region132
        $region131: #{tpu_custom_call.1} parent=127 // pred_region
          %s845 = sand.u32 %s117, 1
          %s846 = scalar_lea.sflag [#allocation4], %s845
          %s847 = sand.u32 %s117, 1
          %s848 = smul.addr %s847, 64
          %s849 = scalar_lea.vmem [#allocation8], %s848
          %851 = dma.done %s846, 1024
        $region132: #{tpu_custom_call.1} parent=127 // pred_fallthru
          _
        // Predicated region
        $region133: #{tpu_custom_call.1} parent=127 // pred_check
          %p852 = pneg %p160
        $region134: #{tpu_custom_call.1} parent=127 // pred_check_branch
          %854 = sbr.rel (%p852) target = $region136
        $region135: #{tpu_custom_call.1} parent=127 // pred_region
          %s855 = sand.u32 %s145, 1
          %s856 = sand.u32 %s145, 1
          %s857 = smul.addr %s856, 128
          %s858 = scalar_lea.vmem [#allocation9], %s857
        $region136: #{tpu_custom_call.1} parent=127 // pred_fallthru
          _
        // Predicated region
        $region137: #{tpu_custom_call.1} parent=127 // pred_check
          %p859 = pneg %p188
        $region138: #{tpu_custom_call.1} parent=127 // pred_check_branch
          %861 = sbr.rel (%p859) target = $region140
        $region139: #{tpu_custom_call.1} parent=127 // pred_region
          %s862 = sand.u32 %s173, 1
          %s863 = sand.u32 %s173, 1
          %s864 = smul.addr %s863, 128
          %s865 = scalar_lea.vmem [#allocation10], %s864
        $region140: #{tpu_custom_call.1} parent=127 // pred_fallthru
          _
      $region128: #{tpu_custom_call.1} parent=5 // pred_fallthru
        _
    $region6: #{tpu_custom_call.1} parent=1 // loop_footer
      %s23 = sadd.s32 1, %s19
    $region7: #{tpu_custom_call.1} parent=1 // loop_footer_branch
      %18 = sbr.rel target = $region3
    $region8: #{tpu_custom_call.1} parent=1 // loop_exit
      _
    %866 = vsyncpa [#allocation3], 1
    %s867 = scalar_lea.sflag [#allocation3], 1
    %868 = vsyncpa %s867, 1
    %869 = vsyncpa [#allocation6], 1
    %870 = vsyncpa [#allocation4], 1
    %s871 = scalar_lea.sflag [#allocation4], 1
    %872 = vsyncpa %s871, 1

// kernel: tpu_custom_call.1
$region0: #{tpu_custom_call.1}
  #allocation0 [shape = 'u32[]', space=smem, size = 0x4, offset = 0x4, fixed_abs, tag = 'smem constant byte address 0x4 - core index']
  #allocation1 [shape = 'u32[72,128]{1,0:T(1,128)}', space=vmem, size = 0x9000, scoped, tag = 'internal scratch']
  %s0 = inlined_call_operand.hbm [shape: f32[2,128,128], index: 0, kind: input, shape index: {}]
  %s1 = inlined_call_operand.hbm [shape: f32[128,128], index: 1, kind: input, shape index: {}]
  %s2 = inlined_call_operand.hbm [shape: f32[128,256], index: 2, kind: input, shape index: {}]
  %s3 = inlined_call_operand.hbm [shape: f32[2,128,128], index: 3, kind: output, shape index: {0}]
  %s4 = inlined_call_operand.vmem [shape: f32[2,2,128,64], index: 4, kind: output, shape index: {1}]
  %s5 = inlined_call_operand.vmem [shape: f32[2,2,128,64], index: 5, kind: output, shape index: {2}]
  %6 = xla_tuple %s3, %s4, %s5
  %s7 = sld [smem:[#allocation0]]
  $region141: #{tpu_custom_call.1} parent=0
    _
  %s9 = ssub.s32 1, %s7
  %s10 = scalar_select 0, %s9, %s7
  $region1: #{tpu_custom_call.1} parent=0
    #allocation2 [shape = 'u8[65536]{0}', space=vmem, size = 0x10000, scoped, tag = 'input window, operand 0']
    #allocation3 [shape = 's32[2]{0}', space=sflag, size = 0x8, scoped, tag = 'scoped memory for tpu_custom_call.1']
    #allocation4 [shape = 's32[2]{0}', space=sflag, size = 0x8, scoped, tag = 'scoped memory for tpu_custom_call.1']
    #allocation5 [shape = 'u8[65536]{0}', space=vmem, size = 0x10000, scoped, tag = 'input window, operand 1, single buffered']
    #allocation6 [shape = 's32[1]{0}', space=sflag, size = 0x4, scoped, tag = 'scoped memory for tpu_custom_call.1']
    #allocation7 [shape = 'u8[131072]{0}', space=vmem, size = 0x20000, scoped, tag = 'input window, operand 2, single buffered']
    #allocation8 [shape = 'u8[65536]{0}', space=vmem, size = 0x10000, scoped, tag = 'output window, operand 0']
    #allocation9 [shape = 'u8[131072]{0}', space=vmem, size = 0x20000, scoped, tag = 'output window, operand 1']
    #allocation10 [shape = 'u8[131072]{0}', space=vmem, size = 0x20000, scoped, tag = 'output window, operand 2']
    %11 = vsyncpa [#allocation3], 0
    %s12 = scalar_lea.sflag [#allocation3], 1
    %13 = vsyncpa %s12, 0
    %14 = vsyncpa [#allocation6], 0
    %15 = vsyncpa [#allocation4], 0
    %s16 = scalar_lea.sflag [#allocation4], 1
    %17 = vsyncpa %s16, 0
    loop: start=0, step=1, limit=6
    $region2: #{tpu_custom_call.1} parent=1 // loop_pre_header
      _
    $region3: #{tpu_custom_call.1} parent=1 // loop_header
      %s19 = sphi 0, %s23
      %p20 = scmp.ge.s32.totalorder %s19, 6
      %s26 = sphi 0, %s38
      %s27 = sphi 0, %s34
      %s28 = sphi 0, %s26
      %s29 = sphi 0, %s27
      %s30 = sphi 0, %s28
      %s31 = sphi 0, %s29
      %s43 = sphi 0, %s45
      %s46 = sphi 0, %s43
      %s47 = sphi 0, %s46
      %s63 = sphi 0, %s47
      %s67 = sphi 0, %s67
      %s69 = sphi 0, %s67
      %s70 = sphi 0, %s69
      %s84 = sphi 0, %s70
      %s88 = sphi 0, %s88
      %s90 = sphi 0, %s88
      %s91 = sphi 0, %s90
      %s105 = sphi 0, %s91
      %s113 = sphi 0, %s115
      %s116 = sphi 0, %s113
      %s117 = sphi 0, %s116
      %s133 = sphi 0, %s117
      %s141 = sphi 0, %s143
      %s144 = sphi 0, %s141
      %s145 = sphi 0, %s144
      %s161 = sphi 0, %s145
      %s169 = sphi 0, %s171
      %s172 = sphi 0, %s169
      %s173 = sphi 0, %s172
      %s189 = sphi 0, %s173
    $region4: #{tpu_custom_call.1} parent=1 // loop_header_branch
      %22 = sbr.rel (%p20) target = $region8
    $region5: #{tpu_custom_call.1} parent=1 // loop_body
      %s24 = ssub.s32 %s19, 1
      %s25 = ssub.s32 %s19, 2
      %s32 = sadd.s32 1, %s27
      %p33 = scmp.ge.s32.totalorder %s32, 2
      %s34 = scalar_select %p33, 0, %s32
      %s35 = sadd.s32 1, %s26
      %s36 = scalar_select %p33, %s35, %s26
      %p37 = scmp.ge.s32.totalorder %s36, 2
      %s38 = scalar_select %p37, 0, %s36
      %s39 = ssub.s32 %s26, %s38
      %s40 = ssub.s32 %s27, %s34
      %s41 = sor.u32 %s39, %s40
      %p42 = scmp.eq.s32.totalorder %s41, 0
      %s44 = sadd.s32 %s43, 1
      %s45 = scalar_select %p42, %s43, %s44
      %p48 = pneg %p42
      %p49 = scmp.eq.s32.totalorder %s19, 3
      %p50 = por %p48, %p49
      %p51 = scmp.ne.s32.totalorder %s43, %s46
      %p52 = scmp.eq.s32.totalorder %s19, 0
      %p53 = por %p51, %p52
      %p54 = scmp.ne.s32.totalorder %s43, %s46
      %p55 = scmp.eq.s32.totalorder %s24, 3
      %p56 = por %p54, %p55
      %p57 = scmp.ne.s32.totalorder %s46, %s47
      %p58 = scmp.eq.s32.totalorder %s24, 0
      %p59 = por %p57, %p58
      %p60 = scmp.ne.s32.totalorder %s46, %s47
      %p61 = scmp.eq.s32.totalorder %s25, 3
      %p62 = por %p60, %p61
      %p64 = scmp.ne.s32.totalorder %s47, %s63
      %p65 = scmp.eq.s32.totalorder %s25, 0
      %p66 = por %p64, %p65
      %s68 = sadd.s32 %s67, 1
      %p71 = scmp.eq.s32.totalorder %s19, 3
      %p72 = scmp.ne.s32.totalorder %s67, %s69
      %p73 = scmp.eq.s32.totalorder %s19, 0
      %p74 = por %p72, %p73
      %p75 = scmp.ne.s32.totalorder %s67, %s69
      %p76 = scmp.eq.s32.totalorder %s24, 3
      %p77 = por %p75, %p76
      %p78 = scmp.ne.s32.totalorder %s69, %s70
      %p79 = scmp.eq.s32.totalorder %s24, 0
      %p80 = por %p78, %p79
      %p81 = scmp.ne.s32.totalorder %s69, %s70
      %p82 = scmp.eq.s32.totalorder %s25, 3
      %p83 = por %p81, %p82
      %p85 = scmp.ne.s32.totalorder %s70, %s84
      %p86 = scmp.eq.s32.totalorder %s25, 0
      %p87 = por %p85, %p86
      %s89 = sadd.s32 %s88, 1
      %p92 = scmp.eq.s32.totalorder %s19, 3
      %p93 = scmp.ne.s32.totalorder %s88, %s90
      %p94 = scmp.eq.s32.totalorder %s19, 0
      %p95 = por %p93, %p94
      %p96 = scmp.ne.s32.totalorder %s88, %s90
      %p97 = scmp.eq.s32.totalorder %s24, 3
      %p98 = por %p96, %p97
      %p99 = scmp.ne.s32.totalorder %s90, %s91
      %p100 = scmp.eq.s32.totalorder %s24, 0
      %p101 = por %p99, %p100
      %p102 = scmp.ne.s32.totalorder %s90, %s91
      %p103 = scmp.eq.s32.totalorder %s25, 3
      %p104 = por %p102, %p103
      %p106 = scmp.ne.s32.totalorder %s91, %s105
      %p107 = scmp.eq.s32.totalorder %s25, 0
      %p108 = por %p106, %p107
      %s109 = ssub.s32 %s26, %s38
      %s110 = ssub.s32 %s27, %s34
      %s111 = sor.u32 %s109, %s110
      %p112 = scmp.eq.s32.totalorder %s111, 0
      %s114 = sadd.s32 %s113, 1
      %s115 = scalar_select %p112, %s113, %s114
      %p118 = pneg %p112
      %p119 = scmp.eq.s32.totalorder %s19, 3
      %p120 = por %p118, %p119
      %p121 = scmp.ne.s32.totalorder %s113, %s116
      %p122 = scmp.eq.s32.totalorder %s19, 0
      %p123 = por %p121, %p122
      %p124 = scmp.ne.s32.totalorder %s113, %s116
      %p125 = scmp.eq.s32.totalorder %s24, 3
      %p126 = por %p124, %p125
      %p127 = scmp.ne.s32.totalorder %s116, %s117
      %p128 = scmp.eq.s32.totalorder %s24, 0
      %p129 = por %p127, %p128
      %p130 = scmp.ne.s32.totalorder %s116, %s117
      %p131 = scmp.eq.s32.totalorder %s25, 3
      %p132 = por %p130, %p131
      %p134 = scmp.ne.s32.totalorder %s117, %s133
      %p135 = scmp.eq.s32.totalorder %s25, 0
      %p136 = por %p134, %p135
      %s137 = ssub.s32 %s26, %s38
      %s138 = ssub.s32 %s27, %s34
      %s139 = sor.u32 %s137, %s138
      %p140 = scmp.eq.s32.totalorder %s139, 0
      %s142 = sadd.s32 %s141, 1
      %s143 = scalar_select %p140, %s141, %s142
      %p146 = pneg %p140
      %p147 = scmp.eq.s32.totalorder %s19, 3
      %p148 = por %p146, %p147
      %p149 = scmp.ne.s32.totalorder %s141, %s144
      %p150 = scmp.eq.s32.totalorder %s19, 0
      %p151 = por %p149, %p150
      %p152 = scmp.ne.s32.totalorder %s141, %s144
      %p153 = scmp.eq.s32.totalorder %s24, 3
      %p154 = por %p152, %p153
      %p155 = scmp.ne.s32.totalorder %s144, %s145
      %p156 = scmp.eq.s32.totalorder %s24, 0
      %p157 = por %p155, %p156
      %p158 = scmp.ne.s32.totalorder %s144, %s145
      %p159 = scmp.eq.s32.totalorder %s25, 3
      %p160 = por %p158, %p159
      %p162 = scmp.ne.s32.totalorder %s145, %s161
      %p163 = scmp.eq.s32.totalorder %s25, 0
      %p164 = por %p162, %p163
      %s165 = ssub.s32 %s26, %s38
      %s166 = ssub.s32 %s27, %s34
      %s167 = sor.u32 %s165, %s166
      %p168 = scmp.eq.s32.totalorder %s167, 0
      %s170 = sadd.s32 %s169, 1
      %s171 = scalar_select %p168, %s169, %s170
      %p174 = pneg %p168
      %p175 = scmp.eq.s32.totalorder %s19, 3
      %p176 = por %p174, %p175
      %p177 = scmp.ne.s32.totalorder %s169, %s172
      %p178 = scmp.eq.s32.totalorder %s19, 0
      %p179 = por %p177, %p178
      %p180 = scmp.ne.s32.totalorder %s169, %s172
      %p181 = scmp.eq.s32.totalorder %s24, 3
      %p182 = por %p180, %p181
      %p183 = scmp.ne.s32.totalorder %s172, %s173
      %p184 = scmp.eq.s32.totalorder %s24, 0
      %p185 = por %p183, %p184
      %p186 = scmp.ne.s32.totalorder %s172, %s173
      %p187 = scmp.eq.s32.totalorder %s25, 3
      %p188 = por %p186, %p187
      %p190 = scmp.ne.s32.totalorder %s173, %s189
      %p191 = scmp.eq.s32.totalorder %s25, 0
      %p192 = por %p190, %p191
      %p193 = scmp.le.s32.totalorder 1, %s19
      %p194 = scmp.lt.s32.totalorder %s19, 5
      %p195 = pnand %p193, %p194
      %p196 = pneg %p195
      // Predicated region
      $region9: #{tpu_custom_call.1} parent=5 // pred_check
        _
      $region10: #{tpu_custom_call.1} parent=5 // pred_check_branch
        %198 = sbr.rel (%p195) target = $region12
      $region11: #{tpu_custom_call.1} parent=5 // pred_region
        %s199 = ssub.s32 %s19, 1
        // Predicated region
        $region13: #{tpu_custom_call.1} parent=11 // pred_check
          %p200 = pneg %p80
        $region14: #{tpu_custom_call.1} parent=11 // pred_check_branch
          %202 = sbr.rel (%p200) target = $region16
        $region15: #{tpu_custom_call.1} parent=11 // pred_region
          %204 = vsyncadd [#allocation6], 0
          %s205 = sshll.u32 %s1, 4
          %s206 = int_to_ptr.hbm [resolvable:$true] %s205
          %s207 = sshll.u32 [#allocation5], 4
          %s208 = int_to_ptr.vmem [resolvable:$true] %s207
          %213 = dma.hbm_to_vmem [thread:$0]  %s206, 2048, %s208, [#allocation6], 128, 128, 8
        $region16: #{tpu_custom_call.1} parent=11 // pred_fallthru
          _
        // Predicated region
        $region17: #{tpu_custom_call.1} parent=11 // pred_check
          %p214 = pneg %p101
        $region18: #{tpu_custom_call.1} parent=11 // pred_check_branch
          %216 = sbr.rel (%p214) target = $region20
        $region19: #{tpu_custom_call.1} parent=11 // pred_region
          %218 = vsyncadd [#allocation6], 0
          %s219 = sshll.u32 %s2, 4
          %s220 = int_to_ptr.hbm [resolvable:$true] %s219
          %s221 = sshll.u32 [#allocation7], 4
          %s222 = int_to_ptr.vmem [resolvable:$true] %s221
          %227 = dma.hbm_to_vmem [thread:$0]  %s220, 4096, %s222, [#allocation6], 256, 256, 16
        $region20: #{tpu_custom_call.1} parent=11 // pred_fallthru
          _
      $region12: #{tpu_custom_call.1} parent=5 // pred_fallthru
        _
      %p228 = scmp.lt.s32.totalorder %s19, 4
      // Predicated region
      $region21: #{tpu_custom_call.1} parent=5 // pred_check
        %p229 = pneg %p228
      $region22: #{tpu_custom_call.1} parent=5 // pred_check_branch
        %231 = sbr.rel (%p229) target = $region24
      $region23: #{tpu_custom_call.1} parent=5 // pred_region
        // Predicated region
        $region25: #{tpu_custom_call.1} parent=23 // pred_check
          %p232 = pneg %p53
        $region26: #{tpu_custom_call.1} parent=23 // pred_check_branch
          %234 = sbr.rel (%p232) target = $region28
        $region27: #{tpu_custom_call.1} parent=23 // pred_region
          %s235 = sand.u32 %s43, 1
          %s236 = scalar_lea.sflag [#allocation3], %s235
          %s237 = sand.u32 %s43, 1
          %s238 = smul.addr %s237, 64
          %s239 = scalar_lea.vmem [#allocation2], %s238
          %s240 = smul.u32 8, %s27
          %242 = vsyncadd %s236, 0
          %s243 = smul.addr %s26, 16
          %s244 = sadd.s32 %s240, %s243
          %s245 = smul.addr %s244, 8
          %s246 = scalar_lea.hbm %s0, %s245
          %s247 = sshll.u32 %s246, 4
          %s248 = int_to_ptr.hbm [resolvable:$true] %s247
          %s249 = sshll.u32 %s239, 4
          %s250 = int_to_ptr.vmem [resolvable:$true] %s249
          %255 = dma.hbm_to_vmem [thread:$0]  %s248, 1024, %s250, %s236, 128, 128, 8
        $region28: #{tpu_custom_call.1} parent=23 // pred_fallthru
          _
      $region24: #{tpu_custom_call.1} parent=5 // pred_fallthru
        _
      %p256 = scmp.le.s32.totalorder 1, %s19
      %p257 = scmp.lt.s32.totalorder %s19, 5
      %p258 = pnand %p256, %p257
      %p259 = pneg %p258
      // Predicated region
      $region29: #{tpu_custom_call.1} parent=5 // pred_check
        _
      $region30: #{tpu_custom_call.1} parent=5 // pred_check_branch
        %261 = sbr.rel (%p258) target = $region32
      $region31: #{tpu_custom_call.1} parent=5 // pred_region
        %s262 = ssub.s32 %s19, 1
        %s263 = sand.u32 %s46, 1
        %s264 = scalar_lea.sflag [#allocation3], %s263
        %s265 = sand.u32 %s46, 1
        %s266 = smul.addr %s265, 64
        %s267 = scalar_lea.vmem [#allocation2], %s266
        // Predicated region
        $region33: #{tpu_custom_call.1} parent=31 // pred_check
          %p268 = pneg %p59
        $region34: #{tpu_custom_call.1} parent=31 // pred_check_branch
          %270 = sbr.rel (%p268) target = $region36
        $region35: #{tpu_custom_call.1} parent=31 // pred_region
          %272 = dma.done %s264, 1024
        $region36: #{tpu_custom_call.1} parent=31 // pred_fallthru
          _
        // Predicated region
        $region37: #{tpu_custom_call.1} parent=31 // pred_check
          %p273 = pneg %p80
        $region38: #{tpu_custom_call.1} parent=31 // pred_check_branch
          %275 = sbr.rel (%p273) target = $region40
        $region39: #{tpu_custom_call.1} parent=31 // pred_region
          %277 = dma.done [#allocation6], 2048
        $region40: #{tpu_custom_call.1} parent=31 // pred_fallthru
          _
        // Predicated region
        $region41: #{tpu_custom_call.1} parent=31 // pred_check
          %p278 = pneg %p101
        $region42: #{tpu_custom_call.1} parent=31 // pred_check_branch
          %280 = sbr.rel (%p278) target = $region44
        $region43: #{tpu_custom_call.1} parent=31 // pred_region
          %282 = dma.done [#allocation6], 4096
        $region44: #{tpu_custom_call.1} parent=31 // pred_fallthru
          _
        %s283 = sand.u32 %s46, 1
        %s284 = scalar_lea.sflag [#allocation3], %s283
        %s285 = sand.u32 %s46, 1
        %s286 = smul.addr %s285, 64
        %s287 = scalar_lea.vmem [#allocation2], %s286
        %p288 = pneg %p59
        %p289 = pneg %p56
        %p290 = pneg %p80
        %p291 = pneg %p77
        %p292 = pneg %p101
        %p293 = pneg %p98
        %p294 = pneg %p129
        %p295 = pneg %p126
        %s296 = sand.u32 %s116, 1
        %s297 = scalar_lea.sflag [#allocation4], %s296
        %s298 = sand.u32 %s116, 1
        %s299 = smul.addr %s298, 64
        %s300 = scalar_lea.vmem [#allocation8], %s299
        %p301 = pneg %p157
        %p302 = pneg %p154
        %s303 = sand.u32 %s144, 1
        %s304 = sand.u32 %s144, 1
        %s305 = smul.addr %s304, 128
        %s306 = scalar_lea.vmem [#allocation9], %s305
        %p307 = pneg %p185
        %p308 = pneg %p182
        %s309 = sand.u32 %s172, 1
        %s310 = sand.u32 %s172, 1
        %s311 = smul.addr %s310, 128
        %s312 = scalar_lea.vmem [#allocation10], %s311
        %s313 = smul.u32 8, %s29
        %s314 = smul.u32 8, %s29
        %s315 = smul.u32 8, %s29
        %s316 = smul.u32 8, %s29
        %v317 = vld [vmem:[%s267] sm:$0xff]
        %v318 = vld [vmem:[%s267 + $0x8] sm:$0xff]
        %v319 = vld [vmem:[%s267 + $0x10] sm:$0xff]
        %v320 = vld [vmem:[%s267 + $0x18] sm:$0xff]
        %v321 = vld [vmem:[%s267 + $0x20] sm:$0xff]
        %v322 = vld [vmem:[%s267 + $0x28] sm:$0xff]
        %v323 = vld [vmem:[%s267 + $0x30] sm:$0xff]
        %v324 = vld [vmem:[%s267 + $0x38] sm:$0xff]
        %v325 = vld [vmem:[#allocation5] sm:$0xff]
        %v326 = vld [vmem:[#allocation5 + $0x8] sm:$0xff]
        %v327 = vld [vmem:[#allocation5 + $0x10] sm:$0xff]
        %v328 = vld [vmem:[#allocation5 + $0x18] sm:$0xff]
        %v329 = vld [vmem:[#allocation5 + $0x20] sm:$0xff]
        %v330 = vld [vmem:[#allocation5 + $0x28] sm:$0xff]
        %v331 = vld [vmem:[#allocation5 + $0x30] sm:$0xff]
        %v332 = vld [vmem:[#allocation5 + $0x38] sm:$0xff]
        %v333 = vld [vmem:[#allocation5 + $0x40] sm:$0xff]
        %v334 = vld [vmem:[#allocation5 + $0x48] sm:$0xff]
        %v335 = vld [vmem:[#allocation5 + $0x50] sm:$0xff]
        %v336 = vld [vmem:[#allocation5 + $0x58] sm:$0xff]
        %v337 = vld [vmem:[#allocation5 + $0x60] sm:$0xff]
        %v338 = vld [vmem:[#allocation5 + $0x68] sm:$0xff]
        %v339 = vld [vmem:[#allocation5 + $0x70] sm:$0xff]
        %v340 = vld [vmem:[#allocation5 + $0x78] sm:$0xff]
        %341 = vmatpush.msra.mxu0 %v340
        %342 = vmatpush.msra.mxu0 %v339
        %343 = vmatpush.msra.mxu0 %v338
        %344 = vmatpush.msra.mxu0 %v337
        %345 = vmatpush.msra.mxu0 %v336
        %346 = vmatpush.msra.mxu0 %v335
        %347 = vmatpush.msra.mxu0 %v334
        %348 = vmatpush.msra.mxu0 %v333
        %349 = vmatpush.msra.mxu0 %v332
        %350 = vmatpush.msra.mxu0 %v331
        %351 = vmatpush.msra.mxu0 %v330
        %352 = vmatpush.msra.mxu0 %v329
        %353 = vmatpush.msra.mxu0 %v328
        %354 = vmatpush.msra.mxu0 %v327
        %355 = vmatpush.msra.mxu0 %v326
        %356 = vmatpush.msra.mxu0 %v325
        %357 = vmatmul.f32.gmra.mxu0 %v317
        %v358 = vpop.f32.mrf.mxu0
        %v359 = vadd.f32 0.0, %v358
        %360 = vmatmul.f32.gmra.mxu0 %v318
        %v361 = vpop.f32.mrf.mxu0
        %v362 = vadd.f32 0.0, %v361
        %363 = vmatmul.f32.gmra.mxu0 %v319
        %v364 = vpop.f32.mrf.mxu0
        %v365 = vadd.f32 0.0, %v364
        %366 = vmatmul.f32.gmra.mxu0 %v320
        %v367 = vpop.f32.mrf.mxu0
        %v368 = vadd.f32 0.0, %v367
        %369 = vmatmul.f32.gmra.mxu0 %v321
        %v370 = vpop.f32.mrf.mxu0
        %v371 = vadd.f32 0.0, %v370
        %372 = vmatmul.f32.gmra.mxu0 %v322
        %v373 = vpop.f32.mrf.mxu0
        %v374 = vadd.f32 0.0, %v373
        %375 = vmatmul.f32.gmra.mxu0 %v323
        %v376 = vpop.f32.mrf.mxu0
        %v377 = vadd.f32 0.0, %v376
        %378 = vmatmul.f32.gmra.mxu0 %v324
        %v379 = vpop.f32.mrf.mxu0
        %v380 = vadd.f32 0.0, %v379
        %381 = vdwg.mxu0
        %v382 = vld [vmem:[#allocation7] sm:$0xff]
        %v383 = vld [vmem:[#allocation7 + $0x8] sm:$0xff]
        %v384 = vld [vmem:[#allocation7 + $0x10] sm:$0xff]
        %v385 = vld [vmem:[#allocation7 + $0x18] sm:$0xff]
        %v386 = vld [vmem:[#allocation7 + $0x20] sm:$0xff]
        %v387 = vld [vmem:[#allocation7 + $0x28] sm:$0xff]
        %v388 = vld [vmem:[#allocation7 + $0x30] sm:$0xff]
        %v389 = vld [vmem:[#allocation7 + $0x38] sm:$0xff]
        %v390 = vld [vmem:[#allocation7 + $0x40] sm:$0xff]
        %v391 = vld [vmem:[#allocation7 + $0x48] sm:$0xff]
        %v392 = vld [vmem:[#allocation7 + $0x50] sm:$0xff]
        %v393 = vld [vmem:[#allocation7 + $0x58] sm:$0xff]
        %v394 = vld [vmem:[#allocation7 + $0x60] sm:$0xff]
        %v395 = vld [vmem:[#allocation7 + $0x68] sm:$0xff]
        %v396 = vld [vmem:[#allocation7 + $0x70] sm:$0xff]
        %v397 = vld [vmem:[#allocation7 + $0x78] sm:$0xff]
        %v398 = vld [vmem:[#allocation7 + $0x80] sm:$0xff]
        %v399 = vld [vmem:[#allocation7 + $0x88] sm:$0xff]
        %v400 = vld [vmem:[#allocation7 + $0x90] sm:$0xff]
        %v401 = vld [vmem:[#allocation7 + $0x98] sm:$0xff]
        %v402 = vld [vmem:[#allocation7 + $0xa0] sm:$0xff]
        %v403 = vld [vmem:[#allocation7 + $0xa8] sm:$0xff]
        %v404 = vld [vmem:[#allocation7 + $0xb0] sm:$0xff]
        %v405 = vld [vmem:[#allocation7 + $0xb8] sm:$0xff]
        %v406 = vld [vmem:[#allocation7 + $0xc0] sm:$0xff]
        %v407 = vld [vmem:[#allocation7 + $0xc8] sm:$0xff]
        %v408 = vld [vmem:[#allocation7 + $0xd0] sm:$0xff]
        %v409 = vld [vmem:[#allocation7 + $0xd8] sm:$0xff]
        %v410 = vld [vmem:[#allocation7 + $0xe0] sm:$0xff]
        %v411 = vld [vmem:[#allocation7 + $0xe8] sm:$0xff]
        %v412 = vld [vmem:[#allocation7 + $0xf0] sm:$0xff]
        %v413 = vld [vmem:[#allocation7 + $0xf8] sm:$0xff]
        %414 = vmatpush.msra.mxu0 %v412
        %415 = vmatpush.msra.mxu0 %v410
        %416 = vmatpush.msra.mxu0 %v408
        %417 = vmatpush.msra.mxu0 %v406
        %418 = vmatpush.msra.mxu0 %v404
        %419 = vmatpush.msra.mxu0 %v402
        %420 = vmatpush.msra.mxu0 %v400
        %421 = vmatpush.msra.mxu0 %v398
        %422 = vmatpush.msra.mxu0 %v396
        %423 = vmatpush.msra.mxu0 %v394
        %424 = vmatpush.msra.mxu0 %v392
        %425 = vmatpush.msra.mxu0 %v390
        %426 = vmatpush.msra.mxu0 %v388
        %427 = vmatpush.msra.mxu0 %v386
        %428 = vmatpush.msra.mxu0 %v384
        %429 = vmatpush.msra.mxu0 %v382
        %430 = vmatmul.f32.gmra.mxu0 %v359
        %v431 = vpop.f32.mrf.mxu0
        %v432 = vadd.f32 0.0, %v431
        %433 = vmatmul.f32.gmra.mxu0 %v362
        %v434 = vpop.f32.mrf.mxu0
        %v435 = vadd.f32 0.0, %v434
        %436 = vmatmul.f32.gmra.mxu0 %v365
        %v437 = vpop.f32.mrf.mxu0
        %v438 = vadd.f32 0.0, %v437
        %439 = vmatmul.f32.gmra.mxu0 %v368
        %v440 = vpop.f32.mrf.mxu0
        %v441 = vadd.f32 0.0, %v440
        %442 = vmatmul.f32.gmra.mxu0 %v371
        %v443 = vpop.f32.mrf.mxu0
        %v444 = vadd.f32 0.0, %v443
        %445 = vmatmul.f32.gmra.mxu0 %v374
        %v446 = vpop.f32.mrf.mxu0
        %v447 = vadd.f32 0.0, %v446
        %448 = vmatmul.f32.gmra.mxu0 %v377
        %v449 = vpop.f32.mrf.mxu0
        %v450 = vadd.f32 0.0, %v449
        %451 = vmatmul.f32.gmra.mxu0 %v380
        %v452 = vpop.f32.mrf.mxu0
        %v453 = vadd.f32 0.0, %v452
        %454 = vdwg.mxu0
        %455 = vmatpush.msra.mxu0 %v413
        %456 = vmatpush.msra.mxu0 %v411
        %457 = vmatpush.msra.mxu0 %v409
        %458 = vmatpush.msra.mxu0 %v407
        %459 = vmatpush.msra.mxu0 %v405
        %460 = vmatpush.msra.mxu0 %v403
        %461 = vmatpush.msra.mxu0 %v401
        %462 = vmatpush.msra.mxu0 %v399
        %463 = vmatpush.msra.mxu0 %v397
        %464 = vmatpush.msra.mxu0 %v395
        %465 = vmatpush.msra.mxu0 %v393
        %466 = vmatpush.msra.mxu0 %v391
        %467 = vmatpush.msra.mxu0 %v389
        %468 = vmatpush.msra.mxu0 %v387
        %469 = vmatpush.msra.mxu0 %v385
        %470 = vmatpush.msra.mxu0 %v383
        %471 = vmatmul.f32.gmra.mxu0 %v359
        %v472 = vpop.f32.mrf.mxu0
        %v473 = vadd.f32 0.0, %v472
        %474 = vmatmul.f32.gmra.mxu0 %v362
        %v475 = vpop.f32.mrf.mxu0
        %v476 = vadd.f32 0.0, %v475
        %477 = vmatmul.f32.gmra.mxu0 %v365
        %v478 = vpop.f32.mrf.mxu0
        %v479 = vadd.f32 0.0, %v478
        %480 = vmatmul.f32.gmra.mxu0 %v368
        %v481 = vpop.f32.mrf.mxu0
        %v482 = vadd.f32 0.0, %v481
        %483 = vmatmul.f32.gmra.mxu0 %v371
        %v484 = vpop.f32.mrf.mxu0
        %v485 = vadd.f32 0.0, %v484
        %486 = vmatmul.f32.gmra.mxu0 %v374
        %v487 = vpop.f32.mrf.mxu0
        %v488 = vadd.f32 0.0, %v487
        %489 = vmatmul.f32.gmra.mxu0 %v377
        %v490 = vpop.f32.mrf.mxu0
        %v491 = vadd.f32 0.0, %v490
        %492 = vmatmul.f32.gmra.mxu0 %v380
        %v493 = vpop.f32.mrf.mxu0
        %v494 = vadd.f32 0.0, %v493
        %495 = vdwg.mxu0
        %496 = vst [vmem:[%s300] sm:$0xff] %v359
        %497 = vst [vmem:[%s300 + $0x8] sm:$0xff] %v362
        %498 = vst [vmem:[%s300 + $0x10] sm:$0xff] %v365
        %499 = vst [vmem:[%s300 + $0x18] sm:$0xff] %v368
        %500 = vst [vmem:[%s300 + $0x20] sm:$0xff] %v371
        %501 = vst [vmem:[%s300 + $0x28] sm:$0xff] %v374
        %502 = vst [vmem:[%s300 + $0x30] sm:$0xff] %v377
        %503 = vst [vmem:[%s300 + $0x38] sm:$0xff] %v380
        %vm504 = vcmask 523264
        %505 = vst.msk [vmem:[%s306] sm:$0xff] %vm504, %v432
        %506 = vst.msk [vmem:[%s306 + $0x8] sm:$0xff] %vm504, %v435
        %507 = vst.msk [vmem:[%s306 + $0x10] sm:$0xff] %vm504, %v438
        %508 = vst.msk [vmem:[%s306 + $0x18] sm:$0xff] %vm504, %v441
        %509 = vst.msk [vmem:[%s306 + $0x20] sm:$0xff] %vm504, %v444
        %510 = vst.msk [vmem:[%s306 + $0x28] sm:$0xff] %vm504, %v447
        %511 = vst.msk [vmem:[%s306 + $0x30] sm:$0xff] %vm504, %v450
        %512 = vst.msk [vmem:[%s306 + $0x38] sm:$0xff] %vm504, %v453
        %513 = vst.msk [vmem:[%s312] sm:$0xff] %vm504, %v473
        %514 = vst.msk [vmem:[%s312 + $0x8] sm:$0xff] %vm504, %v476
        %515 = vst.msk [vmem:[%s312 + $0x10] sm:$0xff] %vm504, %v479
        %516 = vst.msk [vmem:[%s312 + $0x18] sm:$0xff] %vm504, %v482
        %517 = vst.msk [vmem:[%s312 + $0x20] sm:$0xff] %vm504, %v485
        %518 = vst.msk [vmem:[%s312 + $0x28] sm:$0xff] %vm504, %v488
        %519 = vst.msk [vmem:[%s312 + $0x30] sm:$0xff] %vm504, %v491
        %520 = vst.msk [vmem:[%s312 + $0x38] sm:$0xff] %vm504, %v494
        %529 = vrot.lane.b32.xlu0 %v432, 64
        %v530 = vpop.permute.xlu0 %529
        %531 = vrot.lane.b32.xlu0 %v435, 64
        %v532 = vpop.permute.xlu0 %531
        %533 = vrot.lane.b32.xlu0 %v438, 64
        %v534 = vpop.permute.xlu0 %533
        %535 = vrot.lane.b32.xlu0 %v441, 64
        %v536 = vpop.permute.xlu0 %535
        %537 = vrot.lane.b32.xlu0 %v444, 64
        %v538 = vpop.permute.xlu0 %537
        %539 = vrot.lane.b32.xlu0 %v447, 64
        %v540 = vpop.permute.xlu0 %539
        %541 = vrot.lane.b32.xlu0 %v450, 64
        %v542 = vpop.permute.xlu0 %541
        %543 = vrot.lane.b32.xlu0 %v453, 64
        %v544 = vpop.permute.xlu0 %543
        %s553 = scalar_lea.vmem %s306, 64 [#allocation9]
        %554 = vst.msk [vmem:[%s553] sm:$0xff] %vm504, %v530
        %555 = vst.msk [vmem:[%s553 + $0x8] sm:$0xff] %vm504, %v532
        %556 = vst.msk [vmem:[%s553 + $0x10] sm:$0xff] %vm504, %v534
        %557 = vst.msk [vmem:[%s553 + $0x18] sm:$0xff] %vm504, %v536
        %558 = vst.msk [vmem:[%s553 + $0x20] sm:$0xff] %vm504, %v538
        %559 = vst.msk [vmem:[%s553 + $0x28] sm:$0xff] %vm504, %v540
        %560 = vst.msk [vmem:[%s553 + $0x30] sm:$0xff] %vm504, %v542
        %561 = vst.msk [vmem:[%s553 + $0x38] sm:$0xff] %vm504, %v544
        %570 = vrot.lane.b32.xlu0 %v473, 64
        %v571 = vpop.permute.xlu0 %570
        %572 = vrot.lane.b32.xlu0 %v476, 64
        %v573 = vpop.permute.xlu0 %572
        %574 = vrot.lane.b32.xlu0 %v479, 64
        %v575 = vpop.permute.xlu0 %574
        %576 = vrot.lane.b32.xlu0 %v482, 64
        %v577 = vpop.permute.xlu0 %576
        %578 = vrot.lane.b32.xlu0 %v485, 64
        %v579 = vpop.permute.xlu0 %578
        %580 = vrot.lane.b32.xlu0 %v488, 64
        %v581 = vpop.permute.xlu0 %580
        %582 = vrot.lane.b32.xlu0 %v491, 64
        %v583 = vpop.permute.xlu0 %582
        %584 = vrot.lane.b32.xlu0 %v494, 64
        %v585 = vpop.permute.xlu0 %584
        %s594 = scalar_lea.vmem %s312, 64 [#allocation10]
        %595 = vst.msk [vmem:[%s594] sm:$0xff] %vm504, %v571
        %596 = vst.msk [vmem:[%s594 + $0x8] sm:$0xff] %vm504, %v573
        %597 = vst.msk [vmem:[%s594 + $0x10] sm:$0xff] %vm504, %v575
        %598 = vst.msk [vmem:[%s594 + $0x18] sm:$0xff] %vm504, %v577
        %599 = vst.msk [vmem:[%s594 + $0x20] sm:$0xff] %vm504, %v579
        %600 = vst.msk [vmem:[%s594 + $0x28] sm:$0xff] %vm504, %v581
        %601 = vst.msk [vmem:[%s594 + $0x30] sm:$0xff] %vm504, %v583
        %602 = vst.msk [vmem:[%s594 + $0x38] sm:$0xff] %vm504, %v585
        %s603 = sand.u32 %s116, 1
        %s604 = scalar_lea.sflag [#allocation4], %s603
        %s605 = sand.u32 %s116, 1
        %s606 = smul.addr %s605, 64
        %s607 = scalar_lea.vmem [#allocation8], %s606
        %s608 = sand.u32 %s144, 1
        %s609 = sand.u32 %s144, 1
        %s610 = smul.addr %s609, 128
        %s611 = scalar_lea.vmem [#allocation9], %s610
        %s612 = sand.u32 %s172, 1
        %s613 = sand.u32 %s172, 1
        %s614 = smul.addr %s613, 128
        %s615 = scalar_lea.vmem [#allocation10], %s614
        // Predicated region
        $region45: #{tpu_custom_call.1} parent=31 // pred_check
          %p616 = pneg %p126
        $region46: #{tpu_custom_call.1} parent=31 // pred_check_branch
          %618 = sbr.rel (%p616) target = $region48
        $region47: #{tpu_custom_call.1} parent=31 // pred_region
          %s619 = smul.u32 8, %s29
          %621 = vsyncadd %s604, 0
          %s622 = smul.addr %s28, 16
          %s623 = sadd.s32 %s619, %s622
          %s624 = smul.addr %s623, 8
          %s625 = scalar_lea.hbm %s3, %s624
          %s626 = sshll.u32 %s607, 4
          %s627 = int_to_ptr.vmem [resolvable:$true] %s626
          %s628 = sshll.u32 %s625, 4
          %s629 = int_to_ptr.hbm [resolvable:$true] %s628
          %634 = dma.vmem_to_hbm [thread:$0]  %s627, 1024, %s629, %s604, 128, 128, 8
        $region48: #{tpu_custom_call.1} parent=31 // pred_fallthru
          _
        // Predicated region
        $region49: #{tpu_custom_call.1} parent=31 // pred_check
          %p635 = pneg %p154
        $region50: #{tpu_custom_call.1} parent=31 // pred_check_branch
          %637 = sbr.rel (%p635) target = $region52
        $region51: #{tpu_custom_call.1} parent=31 // pred_region
          %s638 = smul.u32 8, %s29
          %s639 = smul.addr %s28, 32
          %s640 = sadd.s32 %s638, %s639
          %s641 = smul.addr %s640, 8
          %s642 = scalar_lea.vmem %s4, %s641
          // Predicated region
          $region53: #{tpu_custom_call.1} parent=51 // pred_check
            _
          $region54: #{tpu_custom_call.1} parent=51 // pred_check_branch
            %644 = sbr.rel (0) target = $region56
          $region55: #{tpu_custom_call.1} parent=51 // pred_region
            // Predicated region
            $region57: #{tpu_custom_call.1} parent=55 // pred_check
              _
            $region58: #{tpu_custom_call.1} parent=55 // pred_check_branch
              %646 = sbr.rel (0) target = $region60
            $region59: #{tpu_custom_call.1} parent=55 // pred_region
              // Predicated region
              $region72: #{tpu_custom_call.1} parent=59 // pred_check
                _
              $region73: #{tpu_custom_call.1} parent=59 // pred_check_branch
                %692 = sbr.rel (0) target = $region75
              $region74: #{tpu_custom_call.1} parent=59 // pred_region
                loop: start=0, step=1, limit=1
                $region76: #{tpu_custom_call.1} parent=74 // loop_pre_header
                  _
                $region77: #{tpu_custom_call.1} parent=74 // loop_header
                  %s694 = sphi 0, %s698
                  %p695 = scmp.ge.s32.totalorder %s694, 1
                  %s699 = sphi %s611, %s611
                  %s700 = sphi %s642, %s642
                $region78: #{tpu_custom_call.1} parent=74 // loop_header_branch
                  %697 = sbr.rel (%p695) target = $region82
                $region79: #{tpu_custom_call.1} parent=74 // loop_body
                  %v701 = vld [vmem:[%s699] sm:$0xff]
                  %702 = vst [vmem:[%s700] sm:$0xff] %v701
                  %v703 = vld [vmem:[%s699 + $0x8] sm:$0xff]
                  %704 = vst [vmem:[%s700 + $0x8] sm:$0xff] %v703
                  %v705 = vld [vmem:[%s699 + $0x10] sm:$0xff]
                  %706 = vst [vmem:[%s700 + $0x10] sm:$0xff] %v705
                  %v707 = vld [vmem:[%s699 + $0x18] sm:$0xff]
                  %708 = vst [vmem:[%s700 + $0x18] sm:$0xff] %v707
                  %v709 = vld [vmem:[%s699 + $0x20] sm:$0xff]
                  %710 = vst [vmem:[%s700 + $0x20] sm:$0xff] %v709
                  %v711 = vld [vmem:[%s699 + $0x28] sm:$0xff]
                  %712 = vst [vmem:[%s700 + $0x28] sm:$0xff] %v711
                  %v713 = vld [vmem:[%s699 + $0x30] sm:$0xff]
                  %714 = vst [vmem:[%s700 + $0x30] sm:$0xff] %v713
                  %v715 = vld [vmem:[%s699 + $0x38] sm:$0xff]
                  %716 = vst [vmem:[%s700 + $0x38] sm:$0xff] %v715
                  %v717 = vld [vmem:[%s699 + $0x40] sm:$0xff]
                  %718 = vst [vmem:[%s700 + $0x80] sm:$0xff] %v717
                  %v719 = vld [vmem:[%s699 + $0x48] sm:$0xff]
                  %720 = vst [vmem:[%s700 + $0x88] sm:$0xff] %v719
                  %v721 = vld [vmem:[%s699 + $0x50] sm:$0xff]
                  %722 = vst [vmem:[%s700 + $0x90] sm:$0xff] %v721
                  %v723 = vld [vmem:[%s699 + $0x58] sm:$0xff]
                  %724 = vst [vmem:[%s700 + $0x98] sm:$0xff] %v723
                  %v725 = vld [vmem:[%s699 + $0x60] sm:$0xff]
                  %726 = vst [vmem:[%s700 + $0xa0] sm:$0xff] %v725
                  %v727 = vld [vmem:[%s699 + $0x68] sm:$0xff]
                  %728 = vst [vmem:[%s700 + $0xa8] sm:$0xff] %v727
                  %v729 = vld [vmem:[%s699 + $0x70] sm:$0xff]
                  %730 = vst [vmem:[%s700 + $0xb0] sm:$0xff] %v729
                  %v731 = vld [vmem:[%s699 + $0x78] sm:$0xff]
                  %732 = vst [vmem:[%s700 + $0xb8] sm:$0xff] %v731
                $region80: #{tpu_custom_call.1} parent=74 // loop_footer
                  %s698 = sadd.s32 1, %s694
                $region81: #{tpu_custom_call.1} parent=74 // loop_footer_branch
                  %693 = sbr.rel target = $region77
                $region82: #{tpu_custom_call.1} parent=74 // loop_exit
                  _
              $region75: #{tpu_custom_call.1} parent=59 // pred_fallthru
                _
              // Predicated region
              $region83: #{tpu_custom_call.1} parent=59 // pred_check
                _
              $region84: #{tpu_custom_call.1} parent=59 // pred_check_branch
                %734 = sbr.rel target = $region86
              $region85: #{tpu_custom_call.1} parent=59 // pred_region
                _
              $region86: #{tpu_custom_call.1} parent=59 // pred_fallthru
                _
            $region60: #{tpu_custom_call.1} parent=55 // pred_fallthru
              _
            // Predicated region
            $region61: #{tpu_custom_call.1} parent=55 // pred_check
              _
            $region62: #{tpu_custom_call.1} parent=55 // pred_check_branch
              %648 = sbr.rel target = $region64
            $region63: #{tpu_custom_call.1} parent=55 // pred_region
              %s650 = ssub.s32 256, 1
              loop: start=0, step=1, limit=1
              $region65: #{tpu_custom_call.1} parent=63 // loop_pre_header
                _
              $region66: #{tpu_custom_call.1} parent=63 // loop_header
                %s652 = sphi 0, %s656
                %p653 = scmp.ge.s32.totalorder %s652, 1
                %s657 = sphi %s611, %s611
                %s658 = sphi %s642, %s642
              $region67: #{tpu_custom_call.1} parent=63 // loop_header_branch
                %655 = sbr.rel (%p653) target = $region71
              $region68: #{tpu_custom_call.1} parent=63 // loop_body
                %v659 = vld [vmem:[%s657] sm:%s650]
                %660 = vst [vmem:[%s658] sm:%s650] %v659
                %v661 = vld [vmem:[%s657 + $0x8] sm:%s650]
                %662 = vst [vmem:[%s658 + $0x8] sm:%s650] %v661
                %v663 = vld [vmem:[%s657 + $0x10] sm:%s650]
                %664 = vst [vmem:[%s658 + $0x10] sm:%s650] %v663
                %v665 = vld [vmem:[%s657 + $0x18] sm:%s650]
                %666 = vst [vmem:[%s658 + $0x18] sm:%s650] %v665
                %v667 = vld [vmem:[%s657 + $0x20] sm:%s650]
                %668 = vst [vmem:[%s658 + $0x20] sm:%s650] %v667
                %v669 = vld [vmem:[%s657 + $0x28] sm:%s650]
                %670 = vst [vmem:[%s658 + $0x28] sm:%s650] %v669
                %v671 = vld [vmem:[%s657 + $0x30] sm:%s650]
                %672 = vst [vmem:[%s658 + $0x30] sm:%s650] %v671
                %v673 = vld [vmem:[%s657 + $0x38] sm:%s650]
                %674 = vst [vmem:[%s658 + $0x38] sm:%s650] %v673
                %v675 = vld [vmem:[%s657 + $0x40] sm:%s650]
                %676 = vst [vmem:[%s658 + $0x80] sm:%s650] %v675
                %v677 = vld [vmem:[%s657 + $0x48] sm:%s650]
                %678 = vst [vmem:[%s658 + $0x88] sm:%s650] %v677
                %v679 = vld [vmem:[%s657 + $0x50] sm:%s650]
                %680 = vst [vmem:[%s658 + $0x90] sm:%s650] %v679
                %v681 = vld [vmem:[%s657 + $0x58] sm:%s650]
                %682 = vst [vmem:[%s658 + $0x98] sm:%s650] %v681
                %v683 = vld [vmem:[%s657 + $0x60] sm:%s650]
                %684 = vst [vmem:[%s658 + $0xa0] sm:%s650] %v683
                %v685 = vld [vmem:[%s657 + $0x68] sm:%s650]
                %686 = vst [vmem:[%s658 + $0xa8] sm:%s650] %v685
                %v687 = vld [vmem:[%s657 + $0x70] sm:%s650]
                %688 = vst [vmem:[%s658 + $0xb0] sm:%s650] %v687
                %v689 = vld [vmem:[%s657 + $0x78] sm:%s650]
                %690 = vst [vmem:[%s658 + $0xb8] sm:%s650] %v689
              $region69: #{tpu_custom_call.1} parent=63 // loop_footer
                %s656 = sadd.s32 1, %s652
              $region70: #{tpu_custom_call.1} parent=63 // loop_footer_branch
                %651 = sbr.rel target = $region66
              $region71: #{tpu_custom_call.1} parent=63 // loop_exit
                _
            $region64: #{tpu_custom_call.1} parent=55 // pred_fallthru
              _
          $region56: #{tpu_custom_call.1} parent=51 // pred_fallthru
            _
          %735 = vnop
        $region52: #{tpu_custom_call.1} parent=31 // pred_fallthru
          _
        // Predicated region
        $region87: #{tpu_custom_call.1} parent=31 // pred_check
          %p736 = pneg %p182
        $region88: #{tpu_custom_call.1} parent=31 // pred_check_branch
          %738 = sbr.rel (%p736) target = $region90
        $region89: #{tpu_custom_call.1} parent=31 // pred_region
          %s739 = smul.u32 8, %s29
          %s740 = smul.addr %s28, 32
          %s741 = sadd.s32 %s739, %s740
          %s742 = smul.addr %s741, 8
          %s743 = scalar_lea.vmem %s5, %s742
          // Predicated region
          $region91: #{tpu_custom_call.1} parent=89 // pred_check
            _
          $region92: #{tpu_custom_call.1} parent=89 // pred_check_branch
            %745 = sbr.rel (0) target = $region94
          $region93: #{tpu_custom_call.1} parent=89 // pred_region
            // Predicated region
            $region95: #{tpu_custom_call.1} parent=93 // pred_check
              _
            $region96: #{tpu_custom_call.1} parent=93 // pred_check_branch
              %747 = sbr.rel (0) target = $region98
            $region97: #{tpu_custom_call.1} parent=93 // pred_region
              // Predicated region
              $region110: #{tpu_custom_call.1} parent=97 // pred_check
                _
              $region111: #{tpu_custom_call.1} parent=97 // pred_check_branch
                %793 = sbr.rel (0) target = $region113
              $region112: #{tpu_custom_call.1} parent=97 // pred_region
                loop: start=0, step=1, limit=1
                $region114: #{tpu_custom_call.1} parent=112 // loop_pre_header
                  _
                $region115: #{tpu_custom_call.1} parent=112 // loop_header
                  %s795 = sphi 0, %s799
                  %p796 = scmp.ge.s32.totalorder %s795, 1
                  %s800 = sphi %s615, %s615
                  %s801 = sphi %s743, %s743
                $region116: #{tpu_custom_call.1} parent=112 // loop_header_branch
                  %798 = sbr.rel (%p796) target = $region120
                $region117: #{tpu_custom_call.1} parent=112 // loop_body
                  %v802 = vld [vmem:[%s800] sm:$0xff]
                  %803 = vst [vmem:[%s801] sm:$0xff] %v802
                  %v804 = vld [vmem:[%s800 + $0x8] sm:$0xff]
                  %805 = vst [vmem:[%s801 + $0x8] sm:$0xff] %v804
                  %v806 = vld [vmem:[%s800 + $0x10] sm:$0xff]
                  %807 = vst [vmem:[%s801 + $0x10] sm:$0xff] %v806
                  %v808 = vld [vmem:[%s800 + $0x18] sm:$0xff]
                  %809 = vst [vmem:[%s801 + $0x18] sm:$0xff] %v808
                  %v810 = vld [vmem:[%s800 + $0x20] sm:$0xff]
                  %811 = vst [vmem:[%s801 + $0x20] sm:$0xff] %v810
                  %v812 = vld [vmem:[%s800 + $0x28] sm:$0xff]
                  %813 = vst [vmem:[%s801 + $0x28] sm:$0xff] %v812
                  %v814 = vld [vmem:[%s800 + $0x30] sm:$0xff]
                  %815 = vst [vmem:[%s801 + $0x30] sm:$0xff] %v814
                  %v816 = vld [vmem:[%s800 + $0x38] sm:$0xff]
                  %817 = vst [vmem:[%s801 + $0x38] sm:$0xff] %v816
                  %v818 = vld [vmem:[%s800 + $0x40] sm:$0xff]
                  %819 = vst [vmem:[%s801 + $0x80] sm:$0xff] %v818
                  %v820 = vld [vmem:[%s800 + $0x48] sm:$0xff]
                  %821 = vst [vmem:[%s801 + $0x88] sm:$0xff] %v820
                  %v822 = vld [vmem:[%s800 + $0x50] sm:$0xff]
                  %823 = vst [vmem:[%s801 + $0x90] sm:$0xff] %v822
                  %v824 = vld [vmem:[%s800 + $0x58] sm:$0xff]
                  %825 = vst [vmem:[%s801 + $0x98] sm:$0xff] %v824
                  %v826 = vld [vmem:[%s800 + $0x60] sm:$0xff]
                  %827 = vst [vmem:[%s801 + $0xa0] sm:$0xff] %v826
                  %v828 = vld [vmem:[%s800 + $0x68] sm:$0xff]
                  %829 = vst [vmem:[%s801 + $0xa8] sm:$0xff] %v828
                  %v830 = vld [vmem:[%s800 + $0x70] sm:$0xff]
                  %831 = vst [vmem:[%s801 + $0xb0] sm:$0xff] %v830
                  %v832 = vld [vmem:[%s800 + $0x78] sm:$0xff]
                  %833 = vst [vmem:[%s801 + $0xb8] sm:$0xff] %v832
                $region118: #{tpu_custom_call.1} parent=112 // loop_footer
                  %s799 = sadd.s32 1, %s795
                $region119: #{tpu_custom_call.1} parent=112 // loop_footer_branch
                  %794 = sbr.rel target = $region115
                $region120: #{tpu_custom_call.1} parent=112 // loop_exit
                  _
              $region113: #{tpu_custom_call.1} parent=97 // pred_fallthru
                _
              // Predicated region
              $region121: #{tpu_custom_call.1} parent=97 // pred_check
                _
              $region122: #{tpu_custom_call.1} parent=97 // pred_check_branch
                %835 = sbr.rel target = $region124
              $region123: #{tpu_custom_call.1} parent=97 // pred_region
                _
              $region124: #{tpu_custom_call.1} parent=97 // pred_fallthru
                _
            $region98: #{tpu_custom_call.1} parent=93 // pred_fallthru
              _
            // Predicated region
            $region99: #{tpu_custom_call.1} parent=93 // pred_check
              _
            $region100: #{tpu_custom_call.1} parent=93 // pred_check_branch
              %749 = sbr.rel target = $region102
            $region101: #{tpu_custom_call.1} parent=93 // pred_region
              %s751 = ssub.s32 256, 1
              loop: start=0, step=1, limit=1
              $region103: #{tpu_custom_call.1} parent=101 // loop_pre_header
                _
              $region104: #{tpu_custom_call.1} parent=101 // loop_header
                %s753 = sphi 0, %s757
                %p754 = scmp.ge.s32.totalorder %s753, 1
                %s758 = sphi %s615, %s615
                %s759 = sphi %s743, %s743
              $region105: #{tpu_custom_call.1} parent=101 // loop_header_branch
                %756 = sbr.rel (%p754) target = $region109
              $region106: #{tpu_custom_call.1} parent=101 // loop_body
                %v760 = vld [vmem:[%s758] sm:%s751]
                %761 = vst [vmem:[%s759] sm:%s751] %v760
                %v762 = vld [vmem:[%s758 + $0x8] sm:%s751]
                %763 = vst [vmem:[%s759 + $0x8] sm:%s751] %v762
                %v764 = vld [vmem:[%s758 + $0x10] sm:%s751]
                %765 = vst [vmem:[%s759 + $0x10] sm:%s751] %v764
                %v766 = vld [vmem:[%s758 + $0x18] sm:%s751]
                %767 = vst [vmem:[%s759 + $0x18] sm:%s751] %v766
                %v768 = vld [vmem:[%s758 + $0x20] sm:%s751]
                %769 = vst [vmem:[%s759 + $0x20] sm:%s751] %v768
                %v770 = vld [vmem:[%s758 + $0x28] sm:%s751]
                %771 = vst [vmem:[%s759 + $0x28] sm:%s751] %v770
                %v772 = vld [vmem:[%s758 + $0x30] sm:%s751]
                %773 = vst [vmem:[%s759 + $0x30] sm:%s751] %v772
                %v774 = vld [vmem:[%s758 + $0x38] sm:%s751]
                %775 = vst [vmem:[%s759 + $0x38] sm:%s751] %v774
                %v776 = vld [vmem:[%s758 + $0x40] sm:%s751]
                %777 = vst [vmem:[%s759 + $0x80] sm:%s751] %v776
                %v778 = vld [vmem:[%s758 + $0x48] sm:%s751]
                %779 = vst [vmem:[%s759 + $0x88] sm:%s751] %v778
                %v780 = vld [vmem:[%s758 + $0x50] sm:%s751]
                %781 = vst [vmem:[%s759 + $0x90] sm:%s751] %v780
                %v782 = vld [vmem:[%s758 + $0x58] sm:%s751]
                %783 = vst [vmem:[%s759 + $0x98] sm:%s751] %v782
                %v784 = vld [vmem:[%s758 + $0x60] sm:%s751]
                %785 = vst [vmem:[%s759 + $0xa0] sm:%s751] %v784
                %v786 = vld [vmem:[%s758 + $0x68] sm:%s751]
                %787 = vst [vmem:[%s759 + $0xa8] sm:%s751] %v786
                %v788 = vld [vmem:[%s758 + $0x70] sm:%s751]
                %789 = vst [vmem:[%s759 + $0xb0] sm:%s751] %v788
                %v790 = vld [vmem:[%s758 + $0x78] sm:%s751]
                %791 = vst [vmem:[%s759 + $0xb8] sm:%s751] %v790
              $region107: #{tpu_custom_call.1} parent=101 // loop_footer
                %s757 = sadd.s32 1, %s753
              $region108: #{tpu_custom_call.1} parent=101 // loop_footer_branch
                %752 = sbr.rel target = $region104
              $region109: #{tpu_custom_call.1} parent=101 // loop_exit
                _
            $region102: #{tpu_custom_call.1} parent=93 // pred_fallthru
              _
          $region94: #{tpu_custom_call.1} parent=89 // pred_fallthru
            _
          %836 = vnop
        $region90: #{tpu_custom_call.1} parent=31 // pred_fallthru
          _
      $region32: #{tpu_custom_call.1} parent=5 // pred_fallthru
        _
      %p837 = scmp.le.s32.totalorder 2, %s19
      // Predicated region
      $region125: #{tpu_custom_call.1} parent=5 // pred_check
        %p838 = pneg %p837
      $region126: #{tpu_custom_call.1} parent=5 // pred_check_branch
        %840 = sbr.rel (%p838) target = $region128
      $region127: #{tpu_custom_call.1} parent=5 // pred_region
        %s841 = ssub.s32 %s19, 2
        // Predicated region
        $region129: #{tpu_custom_call.1} parent=127 // pred_check
          %p842 = pneg %p132
        $region130: #{tpu_custom_call.1} parent=127 // pred_check_branch
          %844 = sbr.rel (%p842) target = $region132
        $region131: #{tpu_custom_call.1} parent=127 // pred_region
          %s845 = sand.u32 %s117, 1
          %s846 = scalar_lea.sflag [#allocation4], %s845
          %s847 = sand.u32 %s117, 1
          %s848 = smul.addr %s847, 64
          %s849 = scalar_lea.vmem [#allocation8], %s848
          %851 = dma.done %s846, 1024
        $region132: #{tpu_custom_call.1} parent=127 // pred_fallthru
          _
        // Predicated region
        $region133: #{tpu_custom_call.1} parent=127 // pred_check
          %p852 = pneg %p160
        $region134: #{tpu_custom_call.1} parent=127 // pred_check_branch
          %854 = sbr.rel (%p852) target = $region136
        $region135: #{tpu_custom_call.1} parent=127 // pred_region
          %s855 = sand.u32 %s145, 1
          %s856 = sand.u32 %s145, 1
          %s857 = smul.addr %s856, 128
          %s858 = scalar_lea.vmem [#allocation9], %s857
        $region136: #{tpu_custom_call.1} parent=127 // pred_fallthru
          _
        // Predicated region
        $region137: #{tpu_custom_call.1} parent=127 // pred_check
          %p859 = pneg %p188
        $region138: #{tpu_custom_call.1} parent=127 // pred_check_branch
          %861 = sbr.rel (%p859) target = $region140
        $region139: #{tpu_custom_call.1} parent=127 // pred_region
          %s862 = sand.u32 %s173, 1
          %s863 = sand.u32 %s173, 1
          %s864 = smul.addr %s863, 128
          %s865 = scalar_lea.vmem [#allocation10], %s864
        $region140: #{tpu_custom_call.1} parent=127 // pred_fallthru
          _
      $region128: #{tpu_custom_call.1} parent=5 // pred_fallthru
        _
    $region6: #{tpu_custom_call.1} parent=1 // loop_footer
      %s23 = sadd.s32 1, %s19
    $region7: #{tpu_custom_call.1} parent=1 // loop_footer_branch
      %18 = sbr.rel target = $region3
    $region8: #{tpu_custom_call.1} parent=1 // loop_exit
      _
    %866 = vsyncpa [#allocation3], 1
    %s867 = scalar_lea.sflag [#allocation3], 1
    %868 = vsyncpa %s867, 1
    %869 = vsyncpa [#allocation6], 1
    %870 = vsyncpa [#allocation4], 1
    %s871 = scalar_lea.sflag [#allocation4], 1
    %872 = vsyncpa %s871, 1

</llo_original>
